<compile_context>
chip_gen: v7x
topology: tpu7x:2x2x1
jax: 0.10.0
libtpu: 0.0.40
codegen_flags: <defaults>
</compile_context>

<pallas_src>
import functools
import math

import jax
import jax.numpy as jnp
from jax import lax
from jax.experimental import pallas as pl
from jax.experimental.pallas import tpu as pltpu


def _mhsa_kernel(xq_ref, xkv_ref, wq_ref, wk_ref, wv_ref, wo_ref,
                 bq_ref, bv_ref, bo_ref, o_ref, y_scr, *, nhead):
    xq = xq_ref[0]                                    # (TQ, E) query rows
    xkv = xkv_ref[0]                                  # (S,  E) key/value rows

    # Fused, lane-dense projections: one (tile,E)@(E,E) MXU pass each.
    # wq_ref / bq_ref already carry the 1/sqrt(head_dim) fold.
    q = jnp.dot(xq, wq_ref[...], preferred_element_type=jnp.float32) + bq_ref[...]
    # K bias cancels exactly under unmasked row softmax -> dropped entirely.
    k = jnp.dot(xkv, wk_ref[...], preferred_element_type=jnp.float32)
    v = jnp.dot(xkv, wv_ref[...], preferred_element_type=jnp.float32) + bv_ref[...]

    tq, embed = q.shape
    hd = embed // nhead

    for h in range(nhead):                            # static, small H
        lo = h * hd
        qh = q[:, lo:lo + hd]                         # (TQ, Hd)
        kh = k[:, lo:lo + hd]                         # (S,  Hd)
        vh = v[:, lo:lo + hd]                         # (S,  Hd)

        # scores = qh @ kh^T (contract head_dim of both; scale pre-folded).
        s = lax.dot_general(qh, kh, (((1,), (1,)), ((), ())),
                            preferred_element_type=jnp.float32)      # (TQ, S)
        s = s - jnp.max(s, axis=-1, keepdims=True)
        p = jnp.exp(s)
        inv = pl.reciprocal(jnp.sum(p, axis=-1, keepdims=True), approx=True)
        p = p * inv                                    # softmax rows

        # Write this head's output into its column band of the concat scratch.
        y_scr[:, lo:lo + hd] = jnp.dot(p, vh, preferred_element_type=jnp.float32)

    # Single full-contraction output projection after the head loop.
    out = jnp.dot(y_scr[...], wo_ref[...], preferred_element_type=jnp.float32) + bo_ref[...]
    o_ref[0] = out.astype(o_ref.dtype)


def prepare_mhsa_params(wq, wk, wv, wo, bq, bk, bv, bo, *, nhead):
    """One-time host-side parameter preparation (hoisted out of the per-call
    path). Inputs use PyTorch nn.Linear layout: weights (out, in), biases (out,)."""
    e = wq.shape[0]
    assert e % nhead == 0
    scale = 1.0 / math.sqrt(e // nhead)
    del bk  # q_i . bk is constant across keys -> cancels in unmasked softmax
    return (
        (wq.T * scale).astype(wq.dtype),   # Wq.T with 1/sqrt(head_dim) folded in
        wk.T,                              # Wk.T
        wv.T,                              # Wv.T
        wo.T,                              # Wo.T
        (bq * scale).reshape(1, e).astype(bq.dtype),
        bv.reshape(1, e),
        bo.reshape(1, e),
    )


def multihead_self_attention(x, params, *, nhead, q_tile=None):
    """y = MultiheadSelfAttention(embed_dim, nhead)(x), eval mode."""
    wq_t, wk_t, wv_t, wo_t, bq2, bv2, bo2 = params
    b, s, e = x.shape
    assert e % nhead == 0

    # Query tiling: live score tile is (TQ, S) instead of (S, S); grid gets
    # B * (S // TQ) parallel steps (v7x: 2 TensorCores, 64 MiB VMEM).
    if q_tile is None:
        q_tile = s if s <= 256 else 256
    assert s % q_tile == 0 and (q_tile == s or q_tile % 8 == 0)
    n_qt = s // q_tile

    # Explicit VMEM budget (with headroom), clamped to a safe range.
    itemsize = max(jnp.dtype(x.dtype).itemsize, 4)
    est = itemsize * (
        2 * (2 * q_tile * e + s * e)          # double-buffered xq/out + xkv slabs
        + 2 * (4 * e * e + 3 * e)             # double-buffered weights + biases
        + q_tile * e                          # y concat scratch
        + 3 * s * e + 2 * q_tile * s          # q/k/v + score temporaries
    )
    vmem_limit = int(min(max(2 * est, 32 * 1024 * 1024), 64 * 1024 * 1024))

    kernel = functools.partial(_mhsa_kernel, nhead=nhead)

    return pl.pallas_call(
        kernel,
        out_shape=jax.ShapeDtypeStruct((b, s, e), x.dtype),
        grid_spec=pltpu.PrefetchScalarGridSpec(
            num_scalar_prefetch=0,
            grid=(b, n_qt),
            in_specs=[
                pl.BlockSpec((1, q_tile, e), lambda bi, qi: (bi, qi, 0)),  # x (query rows)
                pl.BlockSpec((1, s, e), lambda bi, qi: (bi, 0, 0)),        # x (key/value rows)
                pl.BlockSpec((e, e), lambda bi, qi: (0, 0)),               # Wq.T (scale folded)
                pl.BlockSpec((e, e), lambda bi, qi: (0, 0)),               # Wk.T
                pl.BlockSpec((e, e), lambda bi, qi: (0, 0)),               # Wv.T
                pl.BlockSpec((e, e), lambda bi, qi: (0, 0)),               # Wo.T
                pl.BlockSpec((1, e), lambda bi, qi: (0, 0)),               # bq (scale folded)
                pl.BlockSpec((1, e), lambda bi, qi: (0, 0)),               # bv
                pl.BlockSpec((1, e), lambda bi, qi: (0, 0)),               # bo
            ],
            out_specs=pl.BlockSpec((1, q_tile, e), lambda bi, qi: (bi, qi, 0)),
            scratch_shapes=[pltpu.VMEM((q_tile, e), jnp.float32)],
        ),
        compiler_params=pltpu.CompilerParams(
            dimension_semantics=("parallel", "parallel"),
            vmem_limit_bytes=vmem_limit),
    )(x, x, wq_t, wk_t, wv_t, wo_t, bq2, bv2, bo2)


if __name__ == "__main__":
    key = jax.random.PRNGKey(0)
    B, S, E, H = 2, 8, 32, 4          # batch=2, seq=8, embed_dim=32, nhead=4
    Hd = E // H

    keys = jax.random.split(key, 9)
    x = jax.random.normal(keys[0], (B, S, E), dtype=jnp.float32)

    # nn.Linear-style init: U(-1/sqrt(fan_in), 1/sqrt(fan_in)), PyTorch layout.
    lim = 1.0 / math.sqrt(E)
    wq = jax.random.uniform(keys[1], (E, E), jnp.float32, -lim, lim)
    wk = jax.random.uniform(keys[2], (E, E), jnp.float32, -lim, lim)
    wv = jax.random.uniform(keys[3], (E, E), jnp.float32, -lim, lim)
    wo = jax.random.uniform(keys[4], (E, E), jnp.float32, -lim, lim)
    bq = jax.random.uniform(keys[5], (E,), jnp.float32, -lim, lim)
    bk = jax.random.uniform(keys[6], (E,), jnp.float32, -lim, lim)
    bv = jax.random.uniform(keys[7], (E,), jnp.float32, -lim, lim)
    bo = jax.random.uniform(keys[8], (E,), jnp.float32, -lim, lim)

    # One-time parameter prep (hoisted out of the hot path).
    params = prepare_mhsa_params(wq, wk, wv, wo, bq, bk, bv, bo, nhead=H)

    y = multihead_self_attention(x, params, nhead=H)
    y = jax.block_until_ready(y)

    # Pure-JAX reference (same math as the PyTorch module, eval mode).
    def ref_forward(x):
        q = x @ wq.T + bq
        k = x @ wk.T + bk
        v = x @ wv.T + bv
        qh = q.reshape(B, S, H, Hd).transpose(0, 2, 1, 3)
        kh = k.reshape(B, S, H, Hd).transpose(0, 2, 1, 3)
        vh = v.reshape(B, S, H, Hd).transpose(0, 2, 1, 3)
        att = jnp.einsum("bhqd,bhkd->bhqk", qh, kh) / math.sqrt(Hd)
        att = jax.nn.softmax(att, axis=-1)
        yref = jnp.einsum("bhqk,bhkd->bhqd", att, vh)
        yref = yref.transpose(0, 2, 1, 3).reshape(B, S, E)
        return yref @ wo.T + bo

    ref = ref_forward(x)
    err = float(jnp.max(jnp.abs(y - ref)))
    # Slightly looser than before to accommodate the approx EUP reciprocal
    # and the (exactly-cancelling) dropped K bias.
    assert err < 2e-3, f"mismatch vs reference, max abs err = {err}"

    print("KERNEL_OK")
</pallas_src>

<mosaic_0001>
module attributes {stable_mosaic.version = 11 : i64} {
  func.func @_mhsa_kernel(%arg0: i32, %arg1: i32, %arg2: memref<1x8x32xf32, #tpu.memory_space<vmem>>, %arg3: memref<1x8x32xf32, #tpu.memory_space<vmem>>, %arg4: memref<32x32xf32, #tpu.memory_space<vmem>>, %arg5: memref<32x32xf32, #tpu.memory_space<vmem>>, %arg6: memref<32x32xf32, #tpu.memory_space<vmem>>, %arg7: memref<32x32xf32, #tpu.memory_space<vmem>>, %arg8: memref<1x32xf32, #tpu.memory_space<vmem>>, %arg9: memref<1x32xf32, #tpu.memory_space<vmem>>, %arg10: memref<1x32xf32, #tpu.memory_space<vmem>>, %arg11: memref<1x8x32xf32, #tpu.memory_space<vmem>>, %arg12: memref<8x32xf32, #tpu.memory_space<vmem>>) attributes {dimension_semantics = [#tpu.dimension_semantics<parallel>, #tpu.dimension_semantics<parallel>], iteration_bounds = array<i64: 2, 1>, scalar_prefetch = 0 : i64, scratch_operands = 1 : i64, tpu.core_type = #tpu.core_type<tc>, window_params = [{transform_indices = @transform_0, window_bounds = array<i64: 1, 8, 32>}, {transform_indices = @transform_1, window_bounds = array<i64: 1, 8, 32>}, {pipeline_mode = #tpu.pipeline_mode<synchronous>, transform_indices = @transform_2, window_bounds = array<i64: 32, 32>}, {pipeline_mode = #tpu.pipeline_mode<synchronous>, transform_indices = @transform_3, window_bounds = array<i64: 32, 32>}, {pipeline_mode = #tpu.pipeline_mode<synchronous>, transform_indices = @transform_4, window_bounds = array<i64: 32, 32>}, {pipeline_mode = #tpu.pipeline_mode<synchronous>, transform_indices = @transform_5, window_bounds = array<i64: 32, 32>}, {pipeline_mode = #tpu.pipeline_mode<synchronous>, transform_indices = @transform_6, window_bounds = array<i64: 1, 32>}, {pipeline_mode = #tpu.pipeline_mode<synchronous>, transform_indices = @transform_7, window_bounds = array<i64: 1, 32>}, {pipeline_mode = #tpu.pipeline_mode<synchronous>, transform_indices = @transform_8, window_bounds = array<i64: 1, 32>}, {transform_indices = @transform_9, window_bounds = array<i64: 1, 8, 32>}]} {
    %c0 = arith.constant 0 : index
    %c0_0 = arith.constant 0 : index
    %c0_1 = arith.constant 0 : index
    %0 = vector.load %arg2[%c0, %c0_0, %c0_1] : memref<1x8x32xf32, #tpu.memory_space<vmem>>, vector<1x8x32xf32>
    %1 = vector.shape_cast %0 : vector<1x8x32xf32> to vector<8x32xf32>
    %c0_2 = arith.constant 0 : index
    %c0_3 = arith.constant 0 : index
    %c0_4 = arith.constant 0 : index
    %2 = vector.load %arg3[%c0_2, %c0_3, %c0_4] : memref<1x8x32xf32, #tpu.memory_space<vmem>>, vector<1x8x32xf32>
    %3 = vector.shape_cast %2 : vector<1x8x32xf32> to vector<8x32xf32>
    %c0_5 = arith.constant 0 : index
    %c0_6 = arith.constant 0 : index
    %4 = vector.load %arg4[%c0_5, %c0_6] : memref<32x32xf32, #tpu.memory_space<vmem>>, vector<32x32xf32>
    %cst = arith.constant dense<0.000000e+00> : vector<8x32xf32>
    %5 = tpu.matmul %1, %4, %cst {dimension_numbers = #tpu.dot_dimension_numbers<[1], [0], [0], [1], [0, 0, 1, 1], [], []>} : vector<8x32xf32>, vector<32x32xf32>, vector<8x32xf32> -> vector<8x32xf32>
    %c0_7 = arith.constant 0 : index
    %c0_8 = arith.constant 0 : index
    %6 = vector.load %arg8[%c0_7, %c0_8] : memref<1x32xf32, #tpu.memory_space<vmem>>, vector<1x32xf32>
    %7 = vector.broadcast %6 : vector<1x32xf32> to vector<8x32xf32>
    %8 = arith.addf %5, %7 : vector<8x32xf32>
    %c0_9 = arith.constant 0 : index
    %c0_10 = arith.constant 0 : index
    %9 = vector.load %arg5[%c0_9, %c0_10] : memref<32x32xf32, #tpu.memory_space<vmem>>, vector<32x32xf32>
    %cst_11 = arith.constant dense<0.000000e+00> : vector<8x32xf32>
    %10 = tpu.matmul %3, %9, %cst_11 {dimension_numbers = #tpu.dot_dimension_numbers<[1], [0], [0], [1], [0, 0, 1, 1], [], []>} : vector<8x32xf32>, vector<32x32xf32>, vector<8x32xf32> -> vector<8x32xf32>
    %c0_12 = arith.constant 0 : index
    %c0_13 = arith.constant 0 : index
    %11 = vector.load %arg6[%c0_12, %c0_13] : memref<32x32xf32, #tpu.memory_space<vmem>>, vector<32x32xf32>
    %cst_14 = arith.constant dense<0.000000e+00> : vector<8x32xf32>
    %12 = tpu.matmul %3, %11, %cst_14 {dimension_numbers = #tpu.dot_dimension_numbers<[1], [0], [0], [1], [0, 0, 1, 1], [], []>} : vector<8x32xf32>, vector<32x32xf32>, vector<8x32xf32> -> vector<8x32xf32>
    %c0_15 = arith.constant 0 : index
    %c0_16 = arith.constant 0 : index
    %13 = vector.load %arg9[%c0_15, %c0_16] : memref<1x32xf32, #tpu.memory_space<vmem>>, vector<1x32xf32>
    %14 = vector.broadcast %13 : vector<1x32xf32> to vector<8x32xf32>
    %15 = arith.addf %12, %14 : vector<8x32xf32>
    %16 = vector.extract_strided_slice %8 {offsets = [0, 0], sizes = [8, 8], strides = [1, 1]} : vector<8x32xf32> to vector<8x8xf32>
    %17 = vector.extract_strided_slice %10 {offsets = [0, 0], sizes = [8, 8], strides = [1, 1]} : vector<8x32xf32> to vector<8x8xf32>
    %18 = vector.extract_strided_slice %15 {offsets = [0, 0], sizes = [8, 8], strides = [1, 1]} : vector<8x32xf32> to vector<8x8xf32>
    %cst_17 = arith.constant dense<0.000000e+00> : vector<8x8xf32>
    %19 = tpu.matmul %16, %17, %cst_17 {dimension_numbers = #tpu.dot_dimension_numbers<[1], [1], [0], [0], [0, 0, 1, 0], [], []>} : vector<8x8xf32>, vector<8x8xf32>, vector<8x8xf32> -> vector<8x8xf32>
    %cst_18 = arith.constant dense<0xFF800000> : vector<8xf32>
    %20 = vector.multi_reduction <maximumf>, %19, %cst_18 [1] : vector<8x8xf32> to vector<8xf32>
    %21 = vector.shape_cast %20 : vector<8xf32> to vector<8x1xf32>
    %22 = vector.broadcast %21 : vector<8x1xf32> to vector<8x8xf32>
    %23 = arith.subf %19, %22 : vector<8x8xf32>
    %24 = math.exp %23 : vector<8x8xf32>
    %cst_19 = arith.constant dense<0.000000e+00> : vector<8xf32>
    %25 = vector.multi_reduction <add>, %24, %cst_19 [1] : vector<8x8xf32> to vector<8xf32>
    %26 = vector.shape_cast %25 : vector<8xf32> to vector<8x1xf32>
    %27 = tpu.reciprocal %26 {approx = true} : vector<8x1xf32> -> vector<8x1xf32>
    %28 = vector.broadcast %27 : vector<8x1xf32> to vector<8x8xf32>
    %29 = arith.mulf %24, %28 : vector<8x8xf32>
    %cst_20 = arith.constant dense<0.000000e+00> : vector<8x8xf32>
    %30 = tpu.matmul %29, %18, %cst_20 {dimension_numbers = #tpu.dot_dimension_numbers<[1], [0], [0], [1], [0, 0, 1, 1], [], []>} : vector<8x8xf32>, vector<8x8xf32>, vector<8x8xf32> -> vector<8x8xf32>
    %c0_21 = arith.constant 0 : index
    %c0_22 = arith.constant 0 : index
    %31 = vector.load %arg12[%c0_21, %c0_22] : memref<8x32xf32, #tpu.memory_space<vmem>>, vector<8x8xf32>
    tpu.vector_store %arg12[%c0_21, %c0_22], %30 {strides = array<i32>} : memref<8x32xf32, #tpu.memory_space<vmem>>, vector<8x8xf32>,
    %32 = vector.extract_strided_slice %8 {offsets = [0, 8], sizes = [8, 8], strides = [1, 1]} : vector<8x32xf32> to vector<8x8xf32>
    %33 = vector.extract_strided_slice %10 {offsets = [0, 8], sizes = [8, 8], strides = [1, 1]} : vector<8x32xf32> to vector<8x8xf32>
    %34 = vector.extract_strided_slice %15 {offsets = [0, 8], sizes = [8, 8], strides = [1, 1]} : vector<8x32xf32> to vector<8x8xf32>
    %cst_23 = arith.constant dense<0.000000e+00> : vector<8x8xf32>
    %35 = tpu.matmul %32, %33, %cst_23 {dimension_numbers = #tpu.dot_dimension_numbers<[1], [1], [0], [0], [0, 0, 1, 0], [], []>} : vector<8x8xf32>, vector<8x8xf32>, vector<8x8xf32> -> vector<8x8xf32>
    %cst_24 = arith.constant dense<0xFF800000> : vector<8xf32>
    %36 = vector.multi_reduction <maximumf>, %35, %cst_24 [1] : vector<8x8xf32> to vector<8xf32>
    %37 = vector.shape_cast %36 : vector<8xf32> to vector<8x1xf32>
    %38 = vector.broadcast %37 : vector<8x1xf32> to vector<8x8xf32>
    %39 = arith.subf %35, %38 : vector<8x8xf32>
    %40 = math.exp %39 : vector<8x8xf32>
    %cst_25 = arith.constant dense<0.000000e+00> : vector<8xf32>
    %41 = vector.multi_reduction <add>, %40, %cst_25 [1] : vector<8x8xf32> to vector<8xf32>
    %42 = vector.shape_cast %41 : vector<8xf32> to vector<8x1xf32>
    %43 = tpu.reciprocal %42 {approx = true} : vector<8x1xf32> -> vector<8x1xf32>
    %44 = vector.broadcast %43 : vector<8x1xf32> to vector<8x8xf32>
    %45 = arith.mulf %40, %44 : vector<8x8xf32>
    %cst_26 = arith.constant dense<0.000000e+00> : vector<8x8xf32>
    %46 = tpu.matmul %45, %34, %cst_26 {dimension_numbers = #tpu.dot_dimension_numbers<[1], [0], [0], [1], [0, 0, 1, 1], [], []>} : vector<8x8xf32>, vector<8x8xf32>, vector<8x8xf32> -> vector<8x8xf32>
    %c0_27 = arith.constant 0 : index
    %c8 = arith.constant 8 : index
    %47 = vector.load %arg12[%c0_27, %c8] : memref<8x32xf32, #tpu.memory_space<vmem>>, vector<8x8xf32>
    tpu.vector_store %arg12[%c0_27, %c8], %46 {strides = array<i32>} : memref<8x32xf32, #tpu.memory_space<vmem>>, vector<8x8xf32>,
    %48 = vector.extract_strided_slice %8 {offsets = [0, 16], sizes = [8, 8], strides = [1, 1]} : vector<8x32xf32> to vector<8x8xf32>
    %49 = vector.extract_strided_slice %10 {offsets = [0, 16], sizes = [8, 8], strides = [1, 1]} : vector<8x32xf32> to vector<8x8xf32>
    %50 = vector.extract_strided_slice %15 {offsets = [0, 16], sizes = [8, 8], strides = [1, 1]} : vector<8x32xf32> to vector<8x8xf32>
    %cst_28 = arith.constant dense<0.000000e+00> : vector<8x8xf32>
    %51 = tpu.matmul %48, %49, %cst_28 {dimension_numbers = #tpu.dot_dimension_numbers<[1], [1], [0], [0], [0, 0, 1, 0], [], []>} : vector<8x8xf32>, vector<8x8xf32>, vector<8x8xf32> -> vector<8x8xf32>
    %cst_29 = arith.constant dense<0xFF800000> : vector<8xf32>
    %52 = vector.multi_reduction <maximumf>, %51, %cst_29 [1] : vector<8x8xf32> to vector<8xf32>
    %53 = vector.shape_cast %52 : vector<8xf32> to vector<8x1xf32>
    %54 = vector.broadcast %53 : vector<8x1xf32> to vector<8x8xf32>
    %55 = arith.subf %51, %54 : vector<8x8xf32>
    %56 = math.exp %55 : vector<8x8xf32>
    %cst_30 = arith.constant dense<0.000000e+00> : vector<8xf32>
    %57 = vector.multi_reduction <add>, %56, %cst_30 [1] : vector<8x8xf32> to vector<8xf32>
    %58 = vector.shape_cast %57 : vector<8xf32> to vector<8x1xf32>
    %59 = tpu.reciprocal %58 {approx = true} : vector<8x1xf32> -> vector<8x1xf32>
    %60 = vector.broadcast %59 : vector<8x1xf32> to vector<8x8xf32>
    %61 = arith.mulf %56, %60 : vector<8x8xf32>
    %cst_31 = arith.constant dense<0.000000e+00> : vector<8x8xf32>
    %62 = tpu.matmul %61, %50, %cst_31 {dimension_numbers = #tpu.dot_dimension_numbers<[1], [0], [0], [1], [0, 0, 1, 1], [], []>} : vector<8x8xf32>, vector<8x8xf32>, vector<8x8xf32> -> vector<8x8xf32>
    %c0_32 = arith.constant 0 : index
    %c16 = arith.constant 16 : index
    %63 = vector.load %arg12[%c0_32, %c16] : memref<8x32xf32, #tpu.memory_space<vmem>>, vector<8x8xf32>
    tpu.vector_store %arg12[%c0_32, %c16], %62 {strides = array<i32>} : memref<8x32xf32, #tpu.memory_space<vmem>>, vector<8x8xf32>,
    %64 = vector.extract_strided_slice %8 {offsets = [0, 24], sizes = [8, 8], strides = [1, 1]} : vector<8x32xf32> to vector<8x8xf32>
    %65 = vector.extract_strided_slice %10 {offsets = [0, 24], sizes = [8, 8], strides = [1, 1]} : vector<8x32xf32> to vector<8x8xf32>
    %66 = vector.extract_strided_slice %15 {offsets = [0, 24], sizes = [8, 8], strides = [1, 1]} : vector<8x32xf32> to vector<8x8xf32>
    %cst_33 = arith.constant dense<0.000000e+00> : vector<8x8xf32>
    %67 = tpu.matmul %64, %65, %cst_33 {dimension_numbers = #tpu.dot_dimension_numbers<[1], [1], [0], [0], [0, 0, 1, 0], [], []>} : vector<8x8xf32>, vector<8x8xf32>, vector<8x8xf32> -> vector<8x8xf32>
    %cst_34 = arith.constant dense<0xFF800000> : vector<8xf32>
    %68 = vector.multi_reduction <maximumf>, %67, %cst_34 [1] : vector<8x8xf32> to vector<8xf32>
    %69 = vector.shape_cast %68 : vector<8xf32> to vector<8x1xf32>
    %70 = vector.broadcast %69 : vector<8x1xf32> to vector<8x8xf32>
    %71 = arith.subf %67, %70 : vector<8x8xf32>
    %72 = math.exp %71 : vector<8x8xf32>
    %cst_35 = arith.constant dense<0.000000e+00> : vector<8xf32>
    %73 = vector.multi_reduction <add>, %72, %cst_35 [1] : vector<8x8xf32> to vector<8xf32>
    %74 = vector.shape_cast %73 : vector<8xf32> to vector<8x1xf32>
    %75 = tpu.reciprocal %74 {approx = true} : vector<8x1xf32> -> vector<8x1xf32>
    %76 = vector.broadcast %75 : vector<8x1xf32> to vector<8x8xf32>
    %77 = arith.mulf %72, %76 : vector<8x8xf32>
    %cst_36 = arith.constant dense<0.000000e+00> : vector<8x8xf32>
    %78 = tpu.matmul %77, %66, %cst_36 {dimension_numbers = #tpu.dot_dimension_numbers<[1], [0], [0], [1], [0, 0, 1, 1], [], []>} : vector<8x8xf32>, vector<8x8xf32>, vector<8x8xf32> -> vector<8x8xf32>
    %c0_37 = arith.constant 0 : index
    %c24 = arith.constant 24 : index
    %79 = vector.load %arg12[%c0_37, %c24] : memref<8x32xf32, #tpu.memory_space<vmem>>, vector<8x8xf32>
    tpu.vector_store %arg12[%c0_37, %c24], %78 {strides = array<i32>} : memref<8x32xf32, #tpu.memory_space<vmem>>, vector<8x8xf32>,
    %c0_38 = arith.constant 0 : index
    %c0_39 = arith.constant 0 : index
    %80 = vector.load %arg12[%c0_38, %c0_39] : memref<8x32xf32, #tpu.memory_space<vmem>>, vector<8x32xf32>
    %c0_40 = arith.constant 0 : index
    %c0_41 = arith.constant 0 : index
    %81 = vector.load %arg7[%c0_40, %c0_41] : memref<32x32xf32, #tpu.memory_space<vmem>>, vector<32x32xf32>
    %cst_42 = arith.constant dense<0.000000e+00> : vector<8x32xf32>
    %82 = tpu.matmul %80, %81, %cst_42 {dimension_numbers = #tpu.dot_dimension_numbers<[1], [0], [0], [1], [0, 0, 1, 1], [], []>} : vector<8x32xf32>, vector<32x32xf32>, vector<8x32xf32> -> vector<8x32xf32>
    %c0_43 = arith.constant 0 : index
    %c0_44 = arith.constant 0 : index
    %83 = vector.load %arg10[%c0_43, %c0_44] : memref<1x32xf32, #tpu.memory_space<vmem>>, vector<1x32xf32>
    %84 = vector.broadcast %83 : vector<1x32xf32> to vector<8x32xf32>
    %85 = arith.addf %82, %84 : vector<8x32xf32>
    %c0_45 = arith.constant 0 : index
    %c0_46 = arith.constant 0 : index
    %c0_47 = arith.constant 0 : index
    %86 = vector.load %arg11[%c0_45, %c0_46, %c0_47] : memref<1x8x32xf32, #tpu.memory_space<vmem>>, vector<1x8x32xf32>
    %87 = vector.shape_cast %86 : vector<1x8x32xf32> to vector<8x32xf32>
    %88 = vector.shape_cast %85 : vector<8x32xf32> to vector<1x8x32xf32>
    tpu.vector_store %arg11[%c0_45, %c0_46, %c0_47], %88 {strides = array<i32>} : memref<1x8x32xf32, #tpu.memory_space<vmem>>, vector<1x8x32xf32>,
    return
  }
  func.func @transform_0(%arg0: i32, %arg1: i32) -> (i32, i32, i32) {
    %c0_i32 = arith.constant 0 : i32
    %c0_i32_0 = arith.constant 0 : i32
    return %arg0, %arg1, %c0_i32 : i32, i32, i32
  }
  func.func @transform_1(%arg0: i32, %arg1: i32) -> (i32, i32, i32) {
    %c0_i32 = arith.constant 0 : i32
    %c0_i32_0 = arith.constant 0 : i32
    %c0_i32_1 = arith.constant 0 : i32
    return %arg0, %c0_i32, %c0_i32_0 : i32, i32, i32
  }
  func.func @transform_2(%arg0: i32, %arg1: i32) -> (i32, i32) {
    %c0_i32 = arith.constant 0 : i32
    %c0_i32_0 = arith.constant 0 : i32
    %c0_i32_1 = arith.constant 0 : i32
    return %c0_i32, %c0_i32_0 : i32, i32
  }
  func.func @transform_3(%arg0: i32, %arg1: i32) -> (i32, i32) {
    %c0_i32 = arith.constant 0 : i32
    %c0_i32_0 = arith.constant 0 : i32
    %c0_i32_1 = arith.constant 0 : i32
    return %c0_i32, %c0_i32_0 : i32, i32
  }
  func.func @transform_4(%arg0: i32, %arg1: i32) -> (i32, i32) {
    %c0_i32 = arith.constant 0 : i32
    %c0_i32_0 = arith.constant 0 : i32
    %c0_i32_1 = arith.constant 0 : i32
    return %c0_i32, %c0_i32_0 : i32, i32
  }
  func.func @transform_5(%arg0: i32, %arg1: i32) -> (i32, i32) {
    %c0_i32 = arith.constant 0 : i32
    %c0_i32_0 = arith.constant 0 : i32
    %c0_i32_1 = arith.constant 0 : i32
    return %c0_i32, %c0_i32_0 : i32, i32
  }
  func.func @transform_6(%arg0: i32, %arg1: i32) -> (i32, i32) {
    %c0_i32 = arith.constant 0 : i32
    %c0_i32_0 = arith.constant 0 : i32
    %c0_i32_1 = arith.constant 0 : i32
    return %c0_i32, %c0_i32_0 : i32, i32
  }
  func.func @transform_7(%arg0: i32, %arg1: i32) -> (i32, i32) {
    %c0_i32 = arith.constant 0 : i32
    %c0_i32_0 = arith.constant 0 : i32
    %c0_i32_1 = arith.constant 0 : i32
    return %c0_i32, %c0_i32_0 : i32, i32
  }
  func.func @transform_8(%arg0: i32, %arg1: i32) -> (i32, i32) {
    %c0_i32 = arith.constant 0 : i32
    %c0_i32_0 = arith.constant 0 : i32
    %c0_i32_1 = arith.constant 0 : i32
    return %c0_i32, %c0_i32_0 : i32, i32
  }
  func.func @transform_9(%arg0: i32, %arg1: i32) -> (i32, i32, i32) {
    %c0_i32 = arith.constant 0 : i32
    %c0_i32_0 = arith.constant 0 : i32
    return %arg0, %arg1, %c0_i32 : i32, i32, i32
  }
}

</mosaic_0001>

<llo_original>
// kernel: tpu_custom_call.1
$region0: #{tpu_custom_call.1}
  #allocation0 [shape = 'u32[]', space=smem, size = 0x4, offset = 0x4, fixed_abs, tag = 'smem constant byte address 0x4 - core index']
  #allocation1 [shape = 'u32[144,128]{1,0:T(1,128)}', space=vmem, size = 0x12000, scoped, tag = 'internal scratch']
  #allocation2 [shape = 'f32[8,32]{1,0:T(8,128)}', space=vmem, size = 0x1000, scoped, tag = 'scratch operand']
  %s0 = inlined_call_operand.hbm [shape: f32[2,8,32], index: 0, kind: input, shape index: {}]
  %s1 = inlined_call_operand.hbm [shape: f32[2,8,32], index: 1, kind: input, shape index: {}]
  %s2 = inlined_call_operand.hbm [shape: f32[32,32], index: 2, kind: input, shape index: {}]
  %s3 = inlined_call_operand.hbm [shape: f32[32,32], index: 3, kind: input, shape index: {}]
  %s4 = inlined_call_operand.hbm [shape: f32[32,32], index: 4, kind: input, shape index: {}]
  %s5 = inlined_call_operand.hbm [shape: f32[32,32], index: 5, kind: input, shape index: {}]
  %s6 = inlined_call_operand.vmem [shape: f32[1,32], index: 6, kind: input, shape index: {}]
  %s7 = inlined_call_operand.vmem [shape: f32[1,32], index: 7, kind: input, shape index: {}]
  %s8 = inlined_call_operand.vmem [shape: f32[1,32], index: 8, kind: input, shape index: {}]
  %s9 = inlined_call_operand.hbm [shape: f32[2,8,32], index: 9, kind: output, shape index: {}]
  %s10 = sld [smem:[#allocation0]]
  $region93: #{tpu_custom_call.1} parent=0
    _
  %s12 = ssub.s32 1, %s10
  %s13 = scalar_select 0, %s12, %s10
  $region1: #{tpu_custom_call.1} parent=0
    #allocation3 [shape = 'u8[8192]{0}', space=vmem, size = 0x2000, scoped, tag = 'input window, operand 0']
    #allocation4 [shape = 's32[2]{0}', space=sflag, size = 0x8, scoped, tag = 'scoped memory for tpu_custom_call.1']
    #allocation5 [shape = 's32[2]{0}', space=sflag, size = 0x8, scoped, tag = 'scoped memory for tpu_custom_call.1']
    #allocation6 [shape = 'u8[8192]{0}', space=vmem, size = 0x2000, scoped, tag = 'input window, operand 1']
    #allocation7 [shape = 's32[2]{0}', space=sflag, size = 0x8, scoped, tag = 'scoped memory for tpu_custom_call.1']
    #allocation8 [shape = 'u8[16384]{0}', space=vmem, size = 0x4000, scoped, tag = 'input window, operand 2, single buffered']
    #allocation9 [shape = 'u8[16384]{0}', space=vmem, size = 0x4000, scoped, tag = 'input window, operand 3, single buffered']
    #allocation10 [shape = 's32[1]{0}', space=sflag, size = 0x4, scoped, tag = 'scoped memory for tpu_custom_call.1']
    #allocation11 [shape = 'u8[16384]{0}', space=vmem, size = 0x4000, scoped, tag = 'input window, operand 4, single buffered']
    #allocation12 [shape = 'u8[16384]{0}', space=vmem, size = 0x4000, scoped, tag = 'input window, operand 5, single buffered']
    #allocation13 [shape = 's32[1]{0}', space=sflag, size = 0x4, scoped, tag = 'scoped memory for tpu_custom_call.1']
    #allocation14 [shape = 'u8[8192]{0}', space=vmem, size = 0x2000, scoped, tag = 'output window, operand 0']
    %14 = vsyncpa [#allocation4], 0
    %s15 = scalar_lea.sflag [#allocation4], 1
    %16 = vsyncpa %s15, 0
    %17 = vsyncpa [#allocation7], 0
    %s18 = scalar_lea.sflag [#allocation7], 1
    %19 = vsyncpa %s18, 0
    %20 = vsyncpa [#allocation10], 0
    %21 = vsyncpa [#allocation13], 0
    %22 = vsyncpa [#allocation5], 0
    %s23 = scalar_lea.sflag [#allocation5], 1
    %24 = vsyncpa %s23, 0
    loop: start=0, step=1, limit=4
    $region2: #{tpu_custom_call.1} parent=1 // loop_pre_header
      _
    $region3: #{tpu_custom_call.1} parent=1 // loop_header
      %s26 = sphi 0, %s30
      %p27 = scmp.ge.s32.totalorder %s26, 4
      %s33 = sphi 0, %s45
      %s34 = sphi 0, %s41
      %s35 = sphi 0, %s33
      %s36 = sphi 0, %s34
      %s37 = sphi 0, %s35
      %s38 = sphi 0, %s36
      %s50 = sphi 0, %s52
      %s53 = sphi 0, %s50
      %s54 = sphi 0, %s53
      %s70 = sphi 0, %s54
      %s76 = sphi 0, %s78
      %s79 = sphi 0, %s76
      %s80 = sphi 0, %s79
      %s96 = sphi 0, %s80
      %s100 = sphi 0, %s100
      %s102 = sphi 0, %s100
      %s103 = sphi 0, %s102
      %s117 = sphi 0, %s103
      %s121 = sphi 0, %s121
      %s123 = sphi 0, %s121
      %s124 = sphi 0, %s123
      %s138 = sphi 0, %s124
      %s142 = sphi 0, %s142
      %s144 = sphi 0, %s142
      %s145 = sphi 0, %s144
      %s159 = sphi 0, %s145
      %s163 = sphi 0, %s163
      %s165 = sphi 0, %s163
      %s166 = sphi 0, %s165
      %s180 = sphi 0, %s166
      %s184 = sphi 0, %s184
      %s186 = sphi 0, %s184
      %s187 = sphi 0, %s186
      %s201 = sphi 0, %s187
      %s205 = sphi 0, %s205
      %s207 = sphi 0, %s205
      %s208 = sphi 0, %s207
      %s222 = sphi 0, %s208
      %s226 = sphi 0, %s226
      %s228 = sphi 0, %s226
      %s229 = sphi 0, %s228
      %s243 = sphi 0, %s229
      %s251 = sphi 0, %s253
      %s254 = sphi 0, %s251
      %s255 = sphi 0, %s254
      %s271 = sphi 0, %s255
    $region4: #{tpu_custom_call.1} parent=1 // loop_header_branch
      %29 = sbr.rel (%p27) target = $region8
    $region5: #{tpu_custom_call.1} parent=1 // loop_body
      %s31 = ssub.s32 %s26, 1
      %s32 = ssub.s32 %s26, 2
      %s39 = sadd.s32 1, %s34
      %p40 = scmp.ge.s32.totalorder %s39, 1
      %s41 = scalar_select %p40, 0, %s39
      %s42 = sadd.s32 1, %s33
      %s43 = scalar_select %p40, %s42, %s33
      %p44 = scmp.ge.s32.totalorder %s43, 2
      %s45 = scalar_select %p44, 0, %s43
      %s46 = ssub.s32 %s33, %s45
      %s47 = ssub.s32 %s34, %s41
      %s48 = sor.u32 %s46, %s47
      %p49 = scmp.eq.s32.totalorder %s48, 0
      %s51 = sadd.s32 %s50, 1
      %s52 = scalar_select %p49, %s50, %s51
      %p55 = pneg %p49
      %p56 = scmp.eq.s32.totalorder %s26, 1
      %p57 = por %p55, %p56
      %p58 = scmp.ne.s32.totalorder %s50, %s53
      %p59 = scmp.eq.s32.totalorder %s26, 0
      %p60 = por %p58, %p59
      %p61 = scmp.ne.s32.totalorder %s50, %s53
      %p62 = scmp.eq.s32.totalorder %s31, 1
      %p63 = por %p61, %p62
      %p64 = scmp.ne.s32.totalorder %s53, %s54
      %p65 = scmp.eq.s32.totalorder %s31, 0
      %p66 = por %p64, %p65
      %p67 = scmp.ne.s32.totalorder %s53, %s54
      %p68 = scmp.eq.s32.totalorder %s32, 1
      %p69 = por %p67, %p68
      %p71 = scmp.ne.s32.totalorder %s54, %s70
      %p72 = scmp.eq.s32.totalorder %s32, 0
      %p73 = por %p71, %p72
      %s74 = ssub.s32 %s33, %s45
      %p75 = scmp.eq.s32.totalorder %s74, 0
      %s77 = sadd.s32 %s76, 1
      %s78 = scalar_select %p75, %s76, %s77
      %p81 = pneg %p75
      %p82 = scmp.eq.s32.totalorder %s26, 1
      %p83 = por %p81, %p82
      %p84 = scmp.ne.s32.totalorder %s76, %s79
      %p85 = scmp.eq.s32.totalorder %s26, 0
      %p86 = por %p84, %p85
      %p87 = scmp.ne.s32.totalorder %s76, %s79
      %p88 = scmp.eq.s32.totalorder %s31, 1
      %p89 = por %p87, %p88
      %p90 = scmp.ne.s32.totalorder %s79, %s80
      %p91 = scmp.eq.s32.totalorder %s31, 0
      %p92 = por %p90, %p91
      %p93 = scmp.ne.s32.totalorder %s79, %s80
      %p94 = scmp.eq.s32.totalorder %s32, 1
      %p95 = por %p93, %p94
      %p97 = scmp.ne.s32.totalorder %s80, %s96
      %p98 = scmp.eq.s32.totalorder %s32, 0
      %p99 = por %p97, %p98
      %s101 = sadd.s32 %s100, 1
      %p104 = scmp.eq.s32.totalorder %s26, 1
      %p105 = scmp.ne.s32.totalorder %s100, %s102
      %p106 = scmp.eq.s32.totalorder %s26, 0
      %p107 = por %p105, %p106
      %p108 = scmp.ne.s32.totalorder %s100, %s102
      %p109 = scmp.eq.s32.totalorder %s31, 1
      %p110 = por %p108, %p109
      %p111 = scmp.ne.s32.totalorder %s102, %s103
      %p112 = scmp.eq.s32.totalorder %s31, 0
      %p113 = por %p111, %p112
      %p114 = scmp.ne.s32.totalorder %s102, %s103
      %p115 = scmp.eq.s32.totalorder %s32, 1
      %p116 = por %p114, %p115
      %p118 = scmp.ne.s32.totalorder %s103, %s117
      %p119 = scmp.eq.s32.totalorder %s32, 0
      %p120 = por %p118, %p119
      %s122 = sadd.s32 %s121, 1
      %p125 = scmp.eq.s32.totalorder %s26, 1
      %p126 = scmp.ne.s32.totalorder %s121, %s123
      %p127 = scmp.eq.s32.totalorder %s26, 0
      %p128 = por %p126, %p127
      %p129 = scmp.ne.s32.totalorder %s121, %s123
      %p130 = scmp.eq.s32.totalorder %s31, 1
      %p131 = por %p129, %p130
      %p132 = scmp.ne.s32.totalorder %s123, %s124
      %p133 = scmp.eq.s32.totalorder %s31, 0
      %p134 = por %p132, %p133
      %p135 = scmp.ne.s32.totalorder %s123, %s124
      %p136 = scmp.eq.s32.totalorder %s32, 1
      %p137 = por %p135, %p136
      %p139 = scmp.ne.s32.totalorder %s124, %s138
      %p140 = scmp.eq.s32.totalorder %s32, 0
      %p141 = por %p139, %p140
      %s143 = sadd.s32 %s142, 1
      %p146 = scmp.eq.s32.totalorder %s26, 1
      %p147 = scmp.ne.s32.totalorder %s142, %s144
      %p148 = scmp.eq.s32.totalorder %s26, 0
      %p149 = por %p147, %p148
      %p150 = scmp.ne.s32.totalorder %s142, %s144
      %p151 = scmp.eq.s32.totalorder %s31, 1
      %p152 = por %p150, %p151
      %p153 = scmp.ne.s32.totalorder %s144, %s145
      %p154 = scmp.eq.s32.totalorder %s31, 0
      %p155 = por %p153, %p154
      %p156 = scmp.ne.s32.totalorder %s144, %s145
      %p157 = scmp.eq.s32.totalorder %s32, 1
      %p158 = por %p156, %p157
      %p160 = scmp.ne.s32.totalorder %s145, %s159
      %p161 = scmp.eq.s32.totalorder %s32, 0
      %p162 = por %p160, %p161
      %s164 = sadd.s32 %s163, 1
      %p167 = scmp.eq.s32.totalorder %s26, 1
      %p168 = scmp.ne.s32.totalorder %s163, %s165
      %p169 = scmp.eq.s32.totalorder %s26, 0
      %p170 = por %p168, %p169
      %p171 = scmp.ne.s32.totalorder %s163, %s165
      %p172 = scmp.eq.s32.totalorder %s31, 1
      %p173 = por %p171, %p172
      %p174 = scmp.ne.s32.totalorder %s165, %s166
      %p175 = scmp.eq.s32.totalorder %s31, 0
      %p176 = por %p174, %p175
      %p177 = scmp.ne.s32.totalorder %s165, %s166
      %p178 = scmp.eq.s32.totalorder %s32, 1
      %p179 = por %p177, %p178
      %p181 = scmp.ne.s32.totalorder %s166, %s180
      %p182 = scmp.eq.s32.totalorder %s32, 0
      %p183 = por %p181, %p182
      %s185 = sadd.s32 %s184, 1
      %p188 = scmp.eq.s32.totalorder %s26, 1
      %p189 = scmp.ne.s32.totalorder %s184, %s186
      %p190 = scmp.eq.s32.totalorder %s26, 0
      %p191 = por %p189, %p190
      %p192 = scmp.ne.s32.totalorder %s184, %s186
      %p193 = scmp.eq.s32.totalorder %s31, 1
      %p194 = por %p192, %p193
      %p195 = scmp.ne.s32.totalorder %s186, %s187
      %p196 = scmp.eq.s32.totalorder %s31, 0
      %p197 = por %p195, %p196
      %p198 = scmp.ne.s32.totalorder %s186, %s187
      %p199 = scmp.eq.s32.totalorder %s32, 1
      %p200 = por %p198, %p199
      %p202 = scmp.ne.s32.totalorder %s187, %s201
      %p203 = scmp.eq.s32.totalorder %s32, 0
      %p204 = por %p202, %p203
      %s206 = sadd.s32 %s205, 1
      %p209 = scmp.eq.s32.totalorder %s26, 1
      %p210 = scmp.ne.s32.totalorder %s205, %s207
      %p211 = scmp.eq.s32.totalorder %s26, 0
      %p212 = por %p210, %p211
      %p213 = scmp.ne.s32.totalorder %s205, %s207
      %p214 = scmp.eq.s32.totalorder %s31, 1
      %p215 = por %p213, %p214
      %p216 = scmp.ne.s32.totalorder %s207, %s208
      %p217 = scmp.eq.s32.totalorder %s31, 0
      %p218 = por %p216, %p217
      %p219 = scmp.ne.s32.totalorder %s207, %s208
      %p220 = scmp.eq.s32.totalorder %s32, 1
      %p221 = por %p219, %p220
      %p223 = scmp.ne.s32.totalorder %s208, %s222
      %p224 = scmp.eq.s32.totalorder %s32, 0
      %p225 = por %p223, %p224
      %s227 = sadd.s32 %s226, 1
      %p230 = scmp.eq.s32.totalorder %s26, 1
      %p231 = scmp.ne.s32.totalorder %s226, %s228
      %p232 = scmp.eq.s32.totalorder %s26, 0
      %p233 = por %p231, %p232
      %p234 = scmp.ne.s32.totalorder %s226, %s228
      %p235 = scmp.eq.s32.totalorder %s31, 1
      %p236 = por %p234, %p235
      %p237 = scmp.ne.s32.totalorder %s228, %s229
      %p238 = scmp.eq.s32.totalorder %s31, 0
      %p239 = por %p237, %p238
      %p240 = scmp.ne.s32.totalorder %s228, %s229
      %p241 = scmp.eq.s32.totalorder %s32, 1
      %p242 = por %p240, %p241
      %p244 = scmp.ne.s32.totalorder %s229, %s243
      %p245 = scmp.eq.s32.totalorder %s32, 0
      %p246 = por %p244, %p245
      %s247 = ssub.s32 %s33, %s45
      %s248 = ssub.s32 %s34, %s41
      %s249 = sor.u32 %s247, %s248
      %p250 = scmp.eq.s32.totalorder %s249, 0
      %s252 = sadd.s32 %s251, 1
      %s253 = scalar_select %p250, %s251, %s252
      %p256 = pneg %p250
      %p257 = scmp.eq.s32.totalorder %s26, 1
      %p258 = por %p256, %p257
      %p259 = scmp.ne.s32.totalorder %s251, %s254
      %p260 = scmp.eq.s32.totalorder %s26, 0
      %p261 = por %p259, %p260
      %p262 = scmp.ne.s32.totalorder %s251, %s254
      %p263 = scmp.eq.s32.totalorder %s31, 1
      %p264 = por %p262, %p263
      %p265 = scmp.ne.s32.totalorder %s254, %s255
      %p266 = scmp.eq.s32.totalorder %s31, 0
      %p267 = por %p265, %p266
      %p268 = scmp.ne.s32.totalorder %s254, %s255
      %p269 = scmp.eq.s32.totalorder %s32, 1
      %p270 = por %p268, %p269
      %p272 = scmp.ne.s32.totalorder %s255, %s271
      %p273 = scmp.eq.s32.totalorder %s32, 0
      %p274 = por %p272, %p273
      %p275 = scmp.le.s32.totalorder 1, %s26
      %p276 = scmp.lt.s32.totalorder %s26, 3
      %p277 = pnand %p275, %p276
      %p278 = pneg %p277
      // Predicated region
      $region9: #{tpu_custom_call.1} parent=5 // pred_check
        _
      $region10: #{tpu_custom_call.1} parent=5 // pred_check_branch
        %280 = sbr.rel (%p277) target = $region12
      $region11: #{tpu_custom_call.1} parent=5 // pred_region
        %s281 = ssub.s32 %s26, 1
        // Predicated region
        $region13: #{tpu_custom_call.1} parent=11 // pred_check
          %p282 = pneg %p113
        $region14: #{tpu_custom_call.1} parent=11 // pred_check_branch
          %284 = sbr.rel (%p282) target = $region16
        $region15: #{tpu_custom_call.1} parent=11 // pred_region
          %s286 = ssub.s32 512, 512
          %287 = vsyncadd [#allocation7], %s286
          %s288 = sshll.u32 [#allocation8], 4
          %s289 = int_to_ptr.vmem [resolvable:$true] %s288
          %294 = dma.hbm_to_vmem [thread:$0]  %s2, 512, %s289, [#allocation7], 128, 128, 8
        $region16: #{tpu_custom_call.1} parent=11 // pred_fallthru
          _
        // Predicated region
        $region17: #{tpu_custom_call.1} parent=11 // pred_check
          %p295 = pneg %p134
        $region18: #{tpu_custom_call.1} parent=11 // pred_check_branch
          %297 = sbr.rel (%p295) target = $region20
        $region19: #{tpu_custom_call.1} parent=11 // pred_region
          %s299 = ssub.s32 512, 512
          %300 = vsyncadd [#allocation10], %s299
          %s301 = sshll.u32 [#allocation9], 4
          %s302 = int_to_ptr.vmem [resolvable:$true] %s301
          %307 = dma.hbm_to_vmem [thread:$0]  %s3, 512, %s302, [#allocation10], 128, 128, 8
        $region20: #{tpu_custom_call.1} parent=11 // pred_fallthru
          _
        // Predicated region
        $region21: #{tpu_custom_call.1} parent=11 // pred_check
          %p308 = pneg %p155
        $region22: #{tpu_custom_call.1} parent=11 // pred_check_branch
          %310 = sbr.rel (%p308) target = $region24
        $region23: #{tpu_custom_call.1} parent=11 // pred_region
          %s312 = ssub.s32 512, 512
          %313 = vsyncadd [#allocation10], %s312
          %s314 = sshll.u32 [#allocation11], 4
          %s315 = int_to_ptr.vmem [resolvable:$true] %s314
          %320 = dma.hbm_to_vmem [thread:$0]  %s4, 512, %s315, [#allocation10], 128, 128, 8
        $region24: #{tpu_custom_call.1} parent=11 // pred_fallthru
          _
        // Predicated region
        $region25: #{tpu_custom_call.1} parent=11 // pred_check
          %p321 = pneg %p176
        $region26: #{tpu_custom_call.1} parent=11 // pred_check_branch
          %323 = sbr.rel (%p321) target = $region28
        $region27: #{tpu_custom_call.1} parent=11 // pred_region
          %s325 = ssub.s32 512, 512
          %326 = vsyncadd [#allocation13], %s325
          %s327 = sshll.u32 [#allocation12], 4
          %s328 = int_to_ptr.vmem [resolvable:$true] %s327
          %333 = dma.hbm_to_vmem [thread:$0]  %s5, 512, %s328, [#allocation13], 128, 128, 8
        $region28: #{tpu_custom_call.1} parent=11 // pred_fallthru
          _
        // Predicated region
        $region29: #{tpu_custom_call.1} parent=11 // pred_check
          %p334 = pneg %p197
        $region30: #{tpu_custom_call.1} parent=11 // pred_check_branch
          %336 = sbr.rel (%p334) target = $region32
        $region31: #{tpu_custom_call.1} parent=11 // pred_region
          _
        $region32: #{tpu_custom_call.1} parent=11 // pred_fallthru
          _
        // Predicated region
        $region33: #{tpu_custom_call.1} parent=11 // pred_check
          %p337 = pneg %p218
        $region34: #{tpu_custom_call.1} parent=11 // pred_check_branch
          %339 = sbr.rel (%p337) target = $region36
        $region35: #{tpu_custom_call.1} parent=11 // pred_region
          _
        $region36: #{tpu_custom_call.1} parent=11 // pred_fallthru
          _
        // Predicated region
        $region37: #{tpu_custom_call.1} parent=11 // pred_check
          %p340 = pneg %p239
        $region38: #{tpu_custom_call.1} parent=11 // pred_check_branch
          %342 = sbr.rel (%p340) target = $region40
        $region39: #{tpu_custom_call.1} parent=11 // pred_region
          _
        $region40: #{tpu_custom_call.1} parent=11 // pred_fallthru
          _
      $region12: #{tpu_custom_call.1} parent=5 // pred_fallthru
        _
      %p343 = scmp.lt.s32.totalorder %s26, 2
      // Predicated region
      $region41: #{tpu_custom_call.1} parent=5 // pred_check
        %p344 = pneg %p343
      $region42: #{tpu_custom_call.1} parent=5 // pred_check_branch
        %346 = sbr.rel (%p344) target = $region44
      $region43: #{tpu_custom_call.1} parent=5 // pred_region
        // Predicated region
        $region45: #{tpu_custom_call.1} parent=43 // pred_check
          %p347 = pneg %p60
        $region46: #{tpu_custom_call.1} parent=43 // pred_check_branch
          %349 = sbr.rel (%p347) target = $region48
        $region47: #{tpu_custom_call.1} parent=43 // pred_region
          %s350 = sand.u32 %s50, 1
          %s351 = scalar_lea.sflag [#allocation4], %s350
          %s352 = sand.u32 %s50, 1
          %s353 = smul.addr %s352, 8
          %s354 = scalar_lea.vmem [#allocation3], %s353
          %s356 = ssub.s32 128, 128
          %357 = vsyncadd %s351, %s356
          %s358 = sadd.s32 %s34, %s33
          %s359 = smul.addr %s358, 128
          %s360 = scalar_lea.hbm %s0, %s359
          %s362 = sshll.u32 %s354, 4
          %s363 = int_to_ptr.vmem [resolvable:$true] %s362
          %365 = dma.hbm_to_vmem [thread:$0]  %s360, 128, %s363, %s351
        $region48: #{tpu_custom_call.1} parent=43 // pred_fallthru
          _
        // Predicated region
        $region49: #{tpu_custom_call.1} parent=43 // pred_check
          %p366 = pneg %p86
        $region50: #{tpu_custom_call.1} parent=43 // pred_check_branch
          %368 = sbr.rel (%p366) target = $region52
        $region51: #{tpu_custom_call.1} parent=43 // pred_region
          %s369 = sand.u32 %s26, 1
          %s370 = scalar_lea.sflag [#allocation7], %s369
          %s371 = sand.u32 %s76, 1
          %s372 = smul.addr %s371, 8
          %s373 = scalar_lea.vmem [#allocation6], %s372
          %s375 = ssub.s32 128, 128
          %376 = vsyncadd %s370, %s375
          %s377 = smul.addr %s33, 128
          %s378 = scalar_lea.hbm %s1, %s377
          %s380 = sshll.u32 %s373, 4
          %s381 = int_to_ptr.vmem [resolvable:$true] %s380
          %383 = dma.hbm_to_vmem [thread:$0]  %s378, 128, %s381, %s370
        $region52: #{tpu_custom_call.1} parent=43 // pred_fallthru
          _
      $region44: #{tpu_custom_call.1} parent=5 // pred_fallthru
        _
      %p384 = scmp.le.s32.totalorder 1, %s26
      %p385 = scmp.lt.s32.totalorder %s26, 3
      %p386 = pnand %p384, %p385
      %p387 = pneg %p386
      // Predicated region
      $region53: #{tpu_custom_call.1} parent=5 // pred_check
        _
      $region54: #{tpu_custom_call.1} parent=5 // pred_check_branch
        %389 = sbr.rel (%p386) target = $region56
      $region55: #{tpu_custom_call.1} parent=5 // pred_region
        %s390 = ssub.s32 %s26, 1
        %s391 = sand.u32 %s53, 1
        %s392 = scalar_lea.sflag [#allocation4], %s391
        %s393 = sand.u32 %s53, 1
        %s394 = smul.addr %s393, 8
        %s395 = scalar_lea.vmem [#allocation3], %s394
        // Predicated region
        $region57: #{tpu_custom_call.1} parent=55 // pred_check
          %p396 = pneg %p66
        $region58: #{tpu_custom_call.1} parent=55 // pred_check_branch
          %398 = sbr.rel (%p396) target = $region60
        $region59: #{tpu_custom_call.1} parent=55 // pred_region
          %399 = dma.done %s392, 128
        $region60: #{tpu_custom_call.1} parent=55 // pred_fallthru
          _
        %s400 = sand.u32 %s31, 1
        %s401 = scalar_lea.sflag [#allocation7], %s400
        %s402 = sand.u32 %s79, 1
        %s403 = smul.addr %s402, 8
        %s404 = scalar_lea.vmem [#allocation6], %s403
        // Predicated region
        $region61: #{tpu_custom_call.1} parent=55 // pred_check
          %p405 = pneg %p92
        $region62: #{tpu_custom_call.1} parent=55 // pred_check_branch
          %407 = sbr.rel (%p405) target = $region64
        $region63: #{tpu_custom_call.1} parent=55 // pred_region
          %408 = dma.done %s401, 128
        $region64: #{tpu_custom_call.1} parent=55 // pred_fallthru
          _
        // Predicated region
        $region65: #{tpu_custom_call.1} parent=55 // pred_check
          %p409 = pneg %p113
        $region66: #{tpu_custom_call.1} parent=55 // pred_check_branch
          %411 = sbr.rel (%p409) target = $region68
        $region67: #{tpu_custom_call.1} parent=55 // pred_region
          %412 = dma.done [#allocation7], 512
        $region68: #{tpu_custom_call.1} parent=55 // pred_fallthru
          _
        // Predicated region
        $region69: #{tpu_custom_call.1} parent=55 // pred_check
          %p413 = pneg %p134
        $region70: #{tpu_custom_call.1} parent=55 // pred_check_branch
          %415 = sbr.rel (%p413) target = $region72
        $region71: #{tpu_custom_call.1} parent=55 // pred_region
          %416 = dma.done [#allocation10], 512
        $region72: #{tpu_custom_call.1} parent=55 // pred_fallthru
          _
        // Predicated region
        $region73: #{tpu_custom_call.1} parent=55 // pred_check
          %p417 = pneg %p155
        $region74: #{tpu_custom_call.1} parent=55 // pred_check_branch
          %419 = sbr.rel (%p417) target = $region76
        $region75: #{tpu_custom_call.1} parent=55 // pred_region
          %420 = dma.done [#allocation10], 512
        $region76: #{tpu_custom_call.1} parent=55 // pred_fallthru
          _
        // Predicated region
        $region77: #{tpu_custom_call.1} parent=55 // pred_check
          %p421 = pneg %p176
        $region78: #{tpu_custom_call.1} parent=55 // pred_check_branch
          %423 = sbr.rel (%p421) target = $region80
        $region79: #{tpu_custom_call.1} parent=55 // pred_region
          %424 = dma.done [#allocation13], 512
        $region80: #{tpu_custom_call.1} parent=55 // pred_fallthru
          _
        %s425 = sand.u32 %s53, 1
        %s426 = scalar_lea.sflag [#allocation4], %s425
        %s427 = sand.u32 %s53, 1
        %s428 = smul.addr %s427, 8
        %s429 = scalar_lea.vmem [#allocation3], %s428
        %p430 = pneg %p66
        %p431 = pneg %p63
        %s432 = sand.u32 %s31, 1
        %s433 = scalar_lea.sflag [#allocation7], %s432
        %s434 = sand.u32 %s79, 1
        %s435 = smul.addr %s434, 8
        %s436 = scalar_lea.vmem [#allocation6], %s435
        %p437 = pneg %p92
        %p438 = pneg %p89
        %p439 = pneg %p113
        %p440 = pneg %p110
        %p441 = pneg %p134
        %p442 = pneg %p131
        %p443 = pneg %p155
        %p444 = pneg %p152
        %p445 = pneg %p176
        %p446 = pneg %p173
        %p447 = pneg %p197
        %p448 = pneg %p194
        %p449 = pneg %p218
        %p450 = pneg %p215
        %p451 = pneg %p239
        %p452 = pneg %p236
        %p453 = pneg %p267
        %p454 = pneg %p264
        %s455 = sand.u32 %s254, 1
        %s456 = scalar_lea.sflag [#allocation5], %s455
        %s457 = sand.u32 %s254, 1
        %s458 = smul.addr %s457, 8
        %s459 = scalar_lea.vmem [#allocation14], %s458
        %v460 = vld [vmem:[%s395] sm:$0xff]
        %v461 = vld [vmem:[%s404] sm:$0xff]
        %v462 = vld [vmem:[#allocation8] sm:$0xff]
        %v463 = vld [vmem:[#allocation8 + $0x8] sm:$0xff]
        %v464 = vld [vmem:[#allocation8 + $0x10] sm:$0xff]
        %v465 = vld [vmem:[#allocation8 + $0x18] sm:$0xff]
        %v466 = vld [vmem:[%s6] sm:$0x1]
        %v468 = vlaneseq
        %v469 = vshrl.u32 %v468, 7
        %v470 = vsub.s32 0, %v469
        %v471 = vrot.slane %v466, %v470
        %vm473 = vcmask 261120
        %v475 = vsel %vm473, %v460, 0
        %477 = vmatprep.subr.mxu0 0.0
        %478 = vmatpush1.msra.mxu0 %v462
        %479 = vmatprep.subr.mxu0 0.0
        %480 = vmatpush1.msra.mxu0 %v463
        %481 = vmatprep.subr.mxu0 0.0
        %482 = vmatpush1.msra.mxu0 %v464
        %483 = vmatprep.subr.mxu0 0.0
        %484 = vmatpush1.msra.mxu0 %v465
        %485 = vmatprep.subr.mxu0 0.0
        %486 = vmatpush1.msra.mxu0 0.0
        %487 = vmatprep.subr.mxu0 0.0
        %488 = vmatpush1.msra.mxu0 0.0
        %489 = vmatprep.subr.mxu0 0.0
        %490 = vmatpush1.msra.mxu0 0.0
        %491 = vmatprep.subr.mxu0 0.0
        %492 = vmatpush1.msra.mxu0 0.0
        %493 = vmatprep.subr.mxu0 0.0
        %494 = vmatpush1.msra.mxu0 0.0
        %495 = vmatprep.subr.mxu0 0.0
        %496 = vmatpush1.msra.mxu0 0.0
        %497 = vmatprep.subr.mxu0 0.0
        %498 = vmatpush1.msra.mxu0 0.0
        %499 = vmatprep.subr.mxu0 0.0
        %500 = vmatpush1.msra.mxu0 0.0
        %501 = vmatprep.subr.mxu0 0.0
        %502 = vmatpush1.msra.mxu0 0.0
        %503 = vmatprep.subr.mxu0 0.0
        %504 = vmatpush1.msra.mxu0 0.0
        %505 = vmatprep.subr.mxu0 0.0
        %506 = vmatpush1.msra.mxu0 0.0
        %507 = vmatprep.subr.mxu0 0.0
        %508 = vmatpush1.msra.mxu0 0.0
        %509 = vmatprep.subr.mxu0 0.0
        %510 = vmatpush1.msra.mxu0 0.0
        %511 = vmatprep.subr.mxu0 0.0
        %512 = vmatpush1.msra.mxu0 0.0
        %513 = vmatprep.subr.mxu0 0.0
        %514 = vmatpush1.msra.mxu0 0.0
        %515 = vmatprep.subr.mxu0 0.0
        %516 = vmatpush1.msra.mxu0 0.0
        %517 = vmatprep.subr.mxu0 0.0
        %518 = vmatpush1.msra.mxu0 0.0
        %519 = vmatprep.subr.mxu0 0.0
        %520 = vmatpush1.msra.mxu0 0.0
        %521 = vmatprep.subr.mxu0 0.0
        %522 = vmatpush1.msra.mxu0 0.0
        %523 = vmatprep.subr.mxu0 0.0
        %524 = vmatpush1.msra.mxu0 0.0
        %525 = vmatprep.subr.mxu0 0.0
        %526 = vmatpush1.msra.mxu0 0.0
        %527 = vmatprep.subr.mxu0 0.0
        %528 = vmatpush1.msra.mxu0 0.0
        %529 = vmatprep.subr.mxu0 0.0
        %530 = vmatpush1.msra.mxu0 0.0
        %531 = vmatprep.subr.mxu0 0.0
        %532 = vmatpush1.msra.mxu0 0.0
        %533 = vmatprep.subr.mxu0 0.0
        %534 = vmatpush1.msra.mxu0 0.0
        %535 = vmatprep.subr.mxu0 0.0
        %536 = vmatpush1.msra.mxu0 0.0
        %537 = vmatprep.subr.mxu0 0.0
        %538 = vmatpush1.msra.mxu0 0.0
        %539 = vmatprep.subr.mxu0 0.0
        %540 = vmatpush1.msra.mxu0 0.0
        %541 = vmatprep.mubr.f32.mxu0 0.0
        %542 = vmatmul.mubr.f32.gmra.mrb[0].mxu0 %v475
        %v543 = vpop.f32.mrb[0].mxu0
        %v544 = vadd.f32 %v471, %v543
        %v545 = vpop.f32.mrb[0].mxu0
        %546 = vdwg.mxu0
        %v547 = vld [vmem:[#allocation9] sm:$0xff]
        %v548 = vld [vmem:[#allocation9 + $0x8] sm:$0xff]
        %v549 = vld [vmem:[#allocation9 + $0x10] sm:$0xff]
        %v550 = vld [vmem:[#allocation9 + $0x18] sm:$0xff]
        %v552 = vsel %vm473, %v461, 0
        %554 = vmatprep.subr.mxu0 0.0
        %555 = vmatpush1.msra.mxu0 %v547
        %556 = vmatprep.subr.mxu0 0.0
        %557 = vmatpush1.msra.mxu0 %v548
        %558 = vmatprep.subr.mxu0 0.0
        %559 = vmatpush1.msra.mxu0 %v549
        %560 = vmatprep.subr.mxu0 0.0
        %561 = vmatpush1.msra.mxu0 %v550
        %562 = vmatprep.subr.mxu0 0.0
        %563 = vmatpush1.msra.mxu0 0.0
        %564 = vmatprep.subr.mxu0 0.0
        %565 = vmatpush1.msra.mxu0 0.0
        %566 = vmatprep.subr.mxu0 0.0
        %567 = vmatpush1.msra.mxu0 0.0
        %568 = vmatprep.subr.mxu0 0.0
        %569 = vmatpush1.msra.mxu0 0.0
        %570 = vmatprep.subr.mxu0 0.0
        %571 = vmatpush1.msra.mxu0 0.0
        %572 = vmatprep.subr.mxu0 0.0
        %573 = vmatpush1.msra.mxu0 0.0
        %574 = vmatprep.subr.mxu0 0.0
        %575 = vmatpush1.msra.mxu0 0.0
        %576 = vmatprep.subr.mxu0 0.0
        %577 = vmatpush1.msra.mxu0 0.0
        %578 = vmatprep.subr.mxu0 0.0
        %579 = vmatpush1.msra.mxu0 0.0
        %580 = vmatprep.subr.mxu0 0.0
        %581 = vmatpush1.msra.mxu0 0.0
        %582 = vmatprep.subr.mxu0 0.0
        %583 = vmatpush1.msra.mxu0 0.0
        %584 = vmatprep.subr.mxu0 0.0
        %585 = vmatpush1.msra.mxu0 0.0
        %586 = vmatprep.subr.mxu0 0.0
        %587 = vmatpush1.msra.mxu0 0.0
        %588 = vmatprep.subr.mxu0 0.0
        %589 = vmatpush1.msra.mxu0 0.0
        %590 = vmatprep.subr.mxu0 0.0
        %591 = vmatpush1.msra.mxu0 0.0
        %592 = vmatprep.subr.mxu0 0.0
        %593 = vmatpush1.msra.mxu0 0.0
        %594 = vmatprep.subr.mxu0 0.0
        %595 = vmatpush1.msra.mxu0 0.0
        %596 = vmatprep.subr.mxu0 0.0
        %597 = vmatpush1.msra.mxu0 0.0
        %598 = vmatprep.subr.mxu0 0.0
        %599 = vmatpush1.msra.mxu0 0.0
        %600 = vmatprep.subr.mxu0 0.0
        %601 = vmatpush1.msra.mxu0 0.0
        %602 = vmatprep.subr.mxu0 0.0
        %603 = vmatpush1.msra.mxu0 0.0
        %604 = vmatprep.subr.mxu0 0.0
        %605 = vmatpush1.msra.mxu0 0.0
        %606 = vmatprep.subr.mxu0 0.0
        %607 = vmatpush1.msra.mxu0 0.0
        %608 = vmatprep.subr.mxu0 0.0
        %609 = vmatpush1.msra.mxu0 0.0
        %610 = vmatprep.subr.mxu0 0.0
        %611 = vmatpush1.msra.mxu0 0.0
        %612 = vmatprep.subr.mxu0 0.0
        %613 = vmatpush1.msra.mxu0 0.0
        %614 = vmatprep.subr.mxu0 0.0
        %615 = vmatpush1.msra.mxu0 0.0
        %616 = vmatprep.subr.mxu0 0.0
        %617 = vmatpush1.msra.mxu0 0.0
        %618 = vmatprep.mubr.f32.mxu0 0.0
        %619 = vmatmul.mubr.f32.gmra.mrb[0].mxu0 %v552
        %v620 = vpop.f32.mrb[0].mxu0
        %v621 = vadd.f32 0.0, %v620
        %v622 = vpop.f32.mrb[0].mxu0
        %623 = vdwg.mxu0
        %v624 = vld [vmem:[#allocation11] sm:$0xff]
        %v625 = vld [vmem:[#allocation11 + $0x8] sm:$0xff]
        %v626 = vld [vmem:[#allocation11 + $0x10] sm:$0xff]
        %v627 = vld [vmem:[#allocation11 + $0x18] sm:$0xff]
        %v628 = vld [vmem:[%s7] sm:$0x1]
        %v630 = vlaneseq
        %v631 = vshrl.u32 %v630, 7
        %v632 = vsub.s32 0, %v631
        %v633 = vrot.slane %v628, %v632
        %635 = vmatprep.subr.mxu0 0.0
        %636 = vmatpush1.msra.mxu0 %v624
        %637 = vmatprep.subr.mxu0 0.0
        %638 = vmatpush1.msra.mxu0 %v625
        %639 = vmatprep.subr.mxu0 0.0
        %640 = vmatpush1.msra.mxu0 %v626
        %641 = vmatprep.subr.mxu0 0.0
        %642 = vmatpush1.msra.mxu0 %v627
        %643 = vmatprep.subr.mxu0 0.0
        %644 = vmatpush1.msra.mxu0 0.0
        %645 = vmatprep.subr.mxu0 0.0
        %646 = vmatpush1.msra.mxu0 0.0
        %647 = vmatprep.subr.mxu0 0.0
        %648 = vmatpush1.msra.mxu0 0.0
        %649 = vmatprep.subr.mxu0 0.0
        %650 = vmatpush1.msra.mxu0 0.0
        %651 = vmatprep.subr.mxu0 0.0
        %652 = vmatpush1.msra.mxu0 0.0
        %653 = vmatprep.subr.mxu0 0.0
        %654 = vmatpush1.msra.mxu0 0.0
        %655 = vmatprep.subr.mxu0 0.0
        %656 = vmatpush1.msra.mxu0 0.0
        %657 = vmatprep.subr.mxu0 0.0
        %658 = vmatpush1.msra.mxu0 0.0
        %659 = vmatprep.subr.mxu0 0.0
        %660 = vmatpush1.msra.mxu0 0.0
        %661 = vmatprep.subr.mxu0 0.0
        %662 = vmatpush1.msra.mxu0 0.0
        %663 = vmatprep.subr.mxu0 0.0
        %664 = vmatpush1.msra.mxu0 0.0
        %665 = vmatprep.subr.mxu0 0.0
        %666 = vmatpush1.msra.mxu0 0.0
        %667 = vmatprep.subr.mxu0 0.0
        %668 = vmatpush1.msra.mxu0 0.0
        %669 = vmatprep.subr.mxu0 0.0
        %670 = vmatpush1.msra.mxu0 0.0
        %671 = vmatprep.subr.mxu0 0.0
        %672 = vmatpush1.msra.mxu0 0.0
        %673 = vmatprep.subr.mxu0 0.0
        %674 = vmatpush1.msra.mxu0 0.0
        %675 = vmatprep.subr.mxu0 0.0
        %676 = vmatpush1.msra.mxu0 0.0
        %677 = vmatprep.subr.mxu0 0.0
        %678 = vmatpush1.msra.mxu0 0.0
        %679 = vmatprep.subr.mxu0 0.0
        %680 = vmatpush1.msra.mxu0 0.0
        %681 = vmatprep.subr.mxu0 0.0
        %682 = vmatpush1.msra.mxu0 0.0
        %683 = vmatprep.subr.mxu0 0.0
        %684 = vmatpush1.msra.mxu0 0.0
        %685 = vmatprep.subr.mxu0 0.0
        %686 = vmatpush1.msra.mxu0 0.0
        %687 = vmatprep.subr.mxu0 0.0
        %688 = vmatpush1.msra.mxu0 0.0
        %689 = vmatprep.subr.mxu0 0.0
        %690 = vmatpush1.msra.mxu0 0.0
        %691 = vmatprep.subr.mxu0 0.0
        %692 = vmatpush1.msra.mxu0 0.0
        %693 = vmatprep.subr.mxu0 0.0
        %694 = vmatpush1.msra.mxu0 0.0
        %695 = vmatprep.subr.mxu0 0.0
        %696 = vmatpush1.msra.mxu0 0.0
        %697 = vmatprep.subr.mxu0 0.0
        %698 = vmatpush1.msra.mxu0 0.0
        %699 = vmatprep.mubr.f32.mxu0 0.0
        %700 = vmatmul.mubr.f32.gmra.mrb[0].mxu0 %v552
        %v701 = vpop.f32.mrb[0].mxu0
        %v702 = vadd.f32 %v633, %v701
        %v703 = vpop.f32.mrb[0].mxu0
        %704 = vdwg.mxu0
        %vm705 = vcmask 64512
        %v707 = vsel %vm705, %v544, 0
        %v710 = vsel %vm705, %v621, 0
        %712 = vmatprep.subr.mxu0 0.0
        %713 = vmatpush1.xpose.msra.mxu0 %v710
        %714 = vmatprep.subr.mxu0 0.0
        %715 = vmatpush1.xpose.msra.mxu0 0.0
        %716 = vmatprep.subr.mxu0 0.0
        %717 = vmatpush1.xpose.msra.mxu0 0.0
        %718 = vmatprep.subr.mxu0 0.0
        %719 = vmatpush1.xpose.msra.mxu0 0.0
        %720 = vmatprep.subr.mxu0 0.0
        %721 = vmatpush1.xpose.msra.mxu0 0.0
        %722 = vmatprep.subr.mxu0 0.0
        %723 = vmatpush1.xpose.msra.mxu0 0.0
        %724 = vmatprep.subr.mxu0 0.0
        %725 = vmatpush1.xpose.msra.mxu0 0.0
        %726 = vmatprep.subr.mxu0 0.0
        %727 = vmatpush1.xpose.msra.mxu0 0.0
        %728 = vmatprep.subr.mxu0 0.0
        %729 = vmatpush1.xpose.msra.mxu0 0.0
        %730 = vmatprep.subr.mxu0 0.0
        %731 = vmatpush1.xpose.msra.mxu0 0.0
        %732 = vmatprep.subr.mxu0 0.0
        %733 = vmatpush1.xpose.msra.mxu0 0.0
        %734 = vmatprep.subr.mxu0 0.0
        %735 = vmatpush1.xpose.msra.mxu0 0.0
        %736 = vmatprep.subr.mxu0 0.0
        %737 = vmatpush1.xpose.msra.mxu0 0.0
        %738 = vmatprep.subr.mxu0 0.0
        %739 = vmatpush1.xpose.msra.mxu0 0.0
        %740 = vmatprep.subr.mxu0 0.0
        %741 = vmatpush1.xpose.msra.mxu0 0.0
        %742 = vmatprep.subr.mxu0 0.0
        %743 = vmatpush1.xpose.msra.mxu0 0.0
        %744 = vmatprep.subr.mxu0 0.0
        %745 = vmatpush1.xpose.msra.mxu0 0.0
        %746 = vmatprep.subr.mxu0 0.0
        %747 = vmatpush1.xpose.msra.mxu0 0.0
        %748 = vmatprep.subr.mxu0 0.0
        %749 = vmatpush1.xpose.msra.mxu0 0.0
        %750 = vmatprep.subr.mxu0 0.0
        %751 = vmatpush1.xpose.msra.mxu0 0.0
        %752 = vmatprep.subr.mxu0 0.0
        %753 = vmatpush1.xpose.msra.mxu0 0.0
        %754 = vmatprep.subr.mxu0 0.0
        %755 = vmatpush1.xpose.msra.mxu0 0.0
        %756 = vmatprep.subr.mxu0 0.0
        %757 = vmatpush1.xpose.msra.mxu0 0.0
        %758 = vmatprep.subr.mxu0 0.0
        %759 = vmatpush1.xpose.msra.mxu0 0.0
        %760 = vmatprep.subr.mxu0 0.0
        %761 = vmatpush1.xpose.msra.mxu0 0.0
        %762 = vmatprep.subr.mxu0 0.0
        %763 = vmatpush1.xpose.msra.mxu0 0.0
        %764 = vmatprep.subr.mxu0 0.0
        %765 = vmatpush1.xpose.msra.mxu0 0.0
        %766 = vmatprep.subr.mxu0 0.0
        %767 = vmatpush1.xpose.msra.mxu0 0.0
        %768 = vmatprep.subr.mxu0 0.0
        %769 = vmatpush1.xpose.msra.mxu0 0.0
        %770 = vmatprep.subr.mxu0 0.0
        %771 = vmatpush1.xpose.msra.mxu0 0.0
        %772 = vmatprep.subr.mxu0 0.0
        %773 = vmatpush1.xpose.msra.mxu0 0.0
        %774 = vmatprep.subr.mxu0 0.0
        %775 = vmatpush1.xpose.msra.mxu0 0.0
        %776 = vmatprep.mubr.f32.mxu0 0.0
        %777 = vmatmul.mubr.f32.gmra.mrb[0].mxu0 %v707
        %v778 = vpop.f32.mrb[0].mxu0
        %v779 = vadd.f32 0.0, %v778
        %v780 = vpop.f32.mrb[0].mxu0
        %781 = vdwg.mxu0
        %v782 = vsel %vm705, %v779, -inf
        %783 = vmax.xlane.f32.xlu0 %v782
        %v784 = vpop.xlane.xlu0 %783
        %v785 = vsub.f32 %v779, %v784
        %v786 = vmul.f32 %v785, 1.442695
        %v787 = vpow.pop %v786
        %v788 = vsel %vm705, %v787, 0.0
        %789 = vadd.xlane.f32.xlu0 %v788
        %v790 = vpop.xlane.xlu0 %789
        %v791 = vrcp.pop %v790
        %v792 = vmul.f32 %v787, %v791
        %v794 = vsel %vm705, %v792, 0
        %796 = vmatprep.subr.mxu0 0.0
        %797 = vmatpush1.msra.mxu0 %v702
        %798 = vmatprep.subr.mxu0 0.0
        %799 = vmatpush1.msra.mxu0 0.0
        %800 = vmatprep.subr.mxu0 0.0
        %801 = vmatpush1.msra.mxu0 0.0
        %802 = vmatprep.subr.mxu0 0.0
        %803 = vmatpush1.msra.mxu0 0.0
        %804 = vmatprep.subr.mxu0 0.0
        %805 = vmatpush1.msra.mxu0 0.0
        %806 = vmatprep.subr.mxu0 0.0
        %807 = vmatpush1.msra.mxu0 0.0
        %808 = vmatprep.subr.mxu0 0.0
        %809 = vmatpush1.msra.mxu0 0.0
        %810 = vmatprep.subr.mxu0 0.0
        %811 = vmatpush1.msra.mxu0 0.0
        %812 = vmatprep.subr.mxu0 0.0
        %813 = vmatpush1.msra.mxu0 0.0
        %814 = vmatprep.subr.mxu0 0.0
        %815 = vmatpush1.msra.mxu0 0.0
        %816 = vmatprep.subr.mxu0 0.0
        %817 = vmatpush1.msra.mxu0 0.0
        %818 = vmatprep.subr.mxu0 0.0
        %819 = vmatpush1.msra.mxu0 0.0
        %820 = vmatprep.subr.mxu0 0.0
        %821 = vmatpush1.msra.mxu0 0.0
        %822 = vmatprep.subr.mxu0 0.0
        %823 = vmatpush1.msra.mxu0 0.0
        %824 = vmatprep.subr.mxu0 0.0
        %825 = vmatpush1.msra.mxu0 0.0
        %826 = vmatprep.subr.mxu0 0.0
        %827 = vmatpush1.msra.mxu0 0.0
        %828 = vmatprep.subr.mxu0 0.0
        %829 = vmatpush1.msra.mxu0 0.0
        %830 = vmatprep.subr.mxu0 0.0
        %831 = vmatpush1.msra.mxu0 0.0
        %832 = vmatprep.subr.mxu0 0.0
        %833 = vmatpush1.msra.mxu0 0.0
        %834 = vmatprep.subr.mxu0 0.0
        %835 = vmatpush1.msra.mxu0 0.0
        %836 = vmatprep.subr.mxu0 0.0
        %837 = vmatpush1.msra.mxu0 0.0
        %838 = vmatprep.subr.mxu0 0.0
        %839 = vmatpush1.msra.mxu0 0.0
        %840 = vmatprep.subr.mxu0 0.0
        %841 = vmatpush1.msra.mxu0 0.0
        %842 = vmatprep.subr.mxu0 0.0
        %843 = vmatpush1.msra.mxu0 0.0
        %844 = vmatprep.subr.mxu0 0.0
        %845 = vmatpush1.msra.mxu0 0.0
        %846 = vmatprep.subr.mxu0 0.0
        %847 = vmatpush1.msra.mxu0 0.0
        %848 = vmatprep.subr.mxu0 0.0
        %849 = vmatpush1.msra.mxu0 0.0
        %850 = vmatprep.subr.mxu0 0.0
        %851 = vmatpush1.msra.mxu0 0.0
        %852 = vmatprep.subr.mxu0 0.0
        %853 = vmatpush1.msra.mxu0 0.0
        %854 = vmatprep.subr.mxu0 0.0
        %855 = vmatpush1.msra.mxu0 0.0
        %856 = vmatprep.subr.mxu0 0.0
        %857 = vmatpush1.msra.mxu0 0.0
        %858 = vmatprep.subr.mxu0 0.0
        %859 = vmatpush1.msra.mxu0 0.0
        %860 = vmatprep.mubr.f32.mxu0 0.0
        %861 = vmatmul.mubr.f32.gmra.mrb[0].mxu0 %v794
        %v862 = vpop.f32.mrb[0].mxu0
        %v863 = vadd.f32 0.0, %v862
        %v864 = vpop.f32.mrb[0].mxu0
        %865 = vdwg.mxu0
        %866 = vst.msk [vmem:[#allocation2] sm:$0xff] %vm705, %v863
        %867 = vrot.lane.b32.xlu0 %v544, 120
        %v868 = vpop.permute.xlu0 %867
        %869 = vrot.lane.b32.xlu0 %v621, 120
        %v870 = vpop.permute.xlu0 %869
        %v871 = vsel %vm705, %v868, 0
        %v873 = vsel %vm705, %v870, 0
        %875 = vmatprep.subr.mxu0 0.0
        %876 = vmatpush1.xpose.msra.mxu0 %v873
        %877 = vmatprep.subr.mxu0 0.0
        %878 = vmatpush1.xpose.msra.mxu0 0.0
        %879 = vmatprep.subr.mxu0 0.0
        %880 = vmatpush1.xpose.msra.mxu0 0.0
        %881 = vmatprep.subr.mxu0 0.0
        %882 = vmatpush1.xpose.msra.mxu0 0.0
        %883 = vmatprep.subr.mxu0 0.0
        %884 = vmatpush1.xpose.msra.mxu0 0.0
        %885 = vmatprep.subr.mxu0 0.0
        %886 = vmatpush1.xpose.msra.mxu0 0.0
        %887 = vmatprep.subr.mxu0 0.0
        %888 = vmatpush1.xpose.msra.mxu0 0.0
        %889 = vmatprep.subr.mxu0 0.0
        %890 = vmatpush1.xpose.msra.mxu0 0.0
        %891 = vmatprep.subr.mxu0 0.0
        %892 = vmatpush1.xpose.msra.mxu0 0.0
        %893 = vmatprep.subr.mxu0 0.0
        %894 = vmatpush1.xpose.msra.mxu0 0.0
        %895 = vmatprep.subr.mxu0 0.0
        %896 = vmatpush1.xpose.msra.mxu0 0.0
        %897 = vmatprep.subr.mxu0 0.0
        %898 = vmatpush1.xpose.msra.mxu0 0.0
        %899 = vmatprep.subr.mxu0 0.0
        %900 = vmatpush1.xpose.msra.mxu0 0.0
        %901 = vmatprep.subr.mxu0 0.0
        %902 = vmatpush1.xpose.msra.mxu0 0.0
        %903 = vmatprep.subr.mxu0 0.0
        %904 = vmatpush1.xpose.msra.mxu0 0.0
        %905 = vmatprep.subr.mxu0 0.0
        %906 = vmatpush1.xpose.msra.mxu0 0.0
        %907 = vmatprep.subr.mxu0 0.0
        %908 = vmatpush1.xpose.msra.mxu0 0.0
        %909 = vmatprep.subr.mxu0 0.0
        %910 = vmatpush1.xpose.msra.mxu0 0.0
        %911 = vmatprep.subr.mxu0 0.0
        %912 = vmatpush1.xpose.msra.mxu0 0.0
        %913 = vmatprep.subr.mxu0 0.0
        %914 = vmatpush1.xpose.msra.mxu0 0.0
        %915 = vmatprep.subr.mxu0 0.0
        %916 = vmatpush1.xpose.msra.mxu0 0.0
        %917 = vmatprep.subr.mxu0 0.0
        %918 = vmatpush1.xpose.msra.mxu0 0.0
        %919 = vmatprep.subr.mxu0 0.0
        %920 = vmatpush1.xpose.msra.mxu0 0.0
        %921 = vmatprep.subr.mxu0 0.0
        %922 = vmatpush1.xpose.msra.mxu0 0.0
        %923 = vmatprep.subr.mxu0 0.0
        %924 = vmatpush1.xpose.msra.mxu0 0.0
        %925 = vmatprep.subr.mxu0 0.0
        %926 = vmatpush1.xpose.msra.mxu0 0.0
        %927 = vmatprep.subr.mxu0 0.0
        %928 = vmatpush1.xpose.msra.mxu0 0.0
        %929 = vmatprep.subr.mxu0 0.0
        %930 = vmatpush1.xpose.msra.mxu0 0.0
        %931 = vmatprep.subr.mxu0 0.0
        %932 = vmatpush1.xpose.msra.mxu0 0.0
        %933 = vmatprep.subr.mxu0 0.0
        %934 = vmatpush1.xpose.msra.mxu0 0.0
        %935 = vmatprep.subr.mxu0 0.0
        %936 = vmatpush1.xpose.msra.mxu0 0.0
        %937 = vmatprep.subr.mxu0 0.0
        %938 = vmatpush1.xpose.msra.mxu0 0.0
        %939 = vmatprep.mubr.f32.mxu0 0.0
        %940 = vmatmul.mubr.f32.gmra.mrb[0].mxu0 %v871
        %v941 = vpop.f32.mrb[0].mxu0
        %v942 = vadd.f32 0.0, %v941
        %v943 = vpop.f32.mrb[0].mxu0
        %944 = vdwg.mxu0
        %v945 = vsel %vm705, %v942, -inf
        %946 = vmax.xlane.f32.xlu0 %v945
        %v947 = vpop.xlane.xlu0 %946
        %v948 = vsub.f32 %v942, %v947
        %v949 = vmul.f32 %v948, 1.442695
        %v950 = vpow.pop %v949
        %v951 = vsel %vm705, %v950, 0.0
        %952 = vadd.xlane.f32.xlu0 %v951
        %v953 = vpop.xlane.xlu0 %952
        %v954 = vrcp.pop %v953
        %v955 = vmul.f32 %v950, %v954
        %957 = vrot.lane.b32.xlu0 %v702, 120
        %v958 = vpop.permute.xlu0 %957
        %v961 = vsel %vm705, %v955, 0
        %963 = vmatprep.subr.mxu0 0.0
        %964 = vmatpush1.msra.mxu0 %v958
        %965 = vmatprep.subr.mxu0 0.0
        %966 = vmatpush1.msra.mxu0 0.0
        %967 = vmatprep.subr.mxu0 0.0
        %968 = vmatpush1.msra.mxu0 0.0
        %969 = vmatprep.subr.mxu0 0.0
        %970 = vmatpush1.msra.mxu0 0.0
        %971 = vmatprep.subr.mxu0 0.0
        %972 = vmatpush1.msra.mxu0 0.0
        %973 = vmatprep.subr.mxu0 0.0
        %974 = vmatpush1.msra.mxu0 0.0
        %975 = vmatprep.subr.mxu0 0.0
        %976 = vmatpush1.msra.mxu0 0.0
        %977 = vmatprep.subr.mxu0 0.0
        %978 = vmatpush1.msra.mxu0 0.0
        %979 = vmatprep.subr.mxu0 0.0
        %980 = vmatpush1.msra.mxu0 0.0
        %981 = vmatprep.subr.mxu0 0.0
        %982 = vmatpush1.msra.mxu0 0.0
        %983 = vmatprep.subr.mxu0 0.0
        %984 = vmatpush1.msra.mxu0 0.0
        %985 = vmatprep.subr.mxu0 0.0
        %986 = vmatpush1.msra.mxu0 0.0
        %987 = vmatprep.subr.mxu0 0.0
        %988 = vmatpush1.msra.mxu0 0.0
        %989 = vmatprep.subr.mxu0 0.0
        %990 = vmatpush1.msra.mxu0 0.0
        %991 = vmatprep.subr.mxu0 0.0
        %992 = vmatpush1.msra.mxu0 0.0
        %993 = vmatprep.subr.mxu0 0.0
        %994 = vmatpush1.msra.mxu0 0.0
        %995 = vmatprep.subr.mxu0 0.0
        %996 = vmatpush1.msra.mxu0 0.0
        %997 = vmatprep.subr.mxu0 0.0
        %998 = vmatpush1.msra.mxu0 0.0
        %999 = vmatprep.subr.mxu0 0.0
        %1000 = vmatpush1.msra.mxu0 0.0
        %1001 = vmatprep.subr.mxu0 0.0
        %1002 = vmatpush1.msra.mxu0 0.0
        %1003 = vmatprep.subr.mxu0 0.0
        %1004 = vmatpush1.msra.mxu0 0.0
        %1005 = vmatprep.subr.mxu0 0.0
        %1006 = vmatpush1.msra.mxu0 0.0
        %1007 = vmatprep.subr.mxu0 0.0
        %1008 = vmatpush1.msra.mxu0 0.0
        %1009 = vmatprep.subr.mxu0 0.0
        %1010 = vmatpush1.msra.mxu0 0.0
        %1011 = vmatprep.subr.mxu0 0.0
        %1012 = vmatpush1.msra.mxu0 0.0
        %1013 = vmatprep.subr.mxu0 0.0
        %1014 = vmatpush1.msra.mxu0 0.0
        %1015 = vmatprep.subr.mxu0 0.0
        %1016 = vmatpush1.msra.mxu0 0.0
        %1017 = vmatprep.subr.mxu0 0.0
        %1018 = vmatpush1.msra.mxu0 0.0
        %1019 = vmatprep.subr.mxu0 0.0
        %1020 = vmatpush1.msra.mxu0 0.0
        %1021 = vmatprep.subr.mxu0 0.0
        %1022 = vmatpush1.msra.mxu0 0.0
        %1023 = vmatprep.subr.mxu0 0.0
        %1024 = vmatpush1.msra.mxu0 0.0
        %1025 = vmatprep.subr.mxu0 0.0
        %1026 = vmatpush1.msra.mxu0 0.0
        %1027 = vmatprep.mubr.f32.mxu0 0.0
        %1028 = vmatmul.mubr.f32.gmra.mrb[0].mxu0 %v961
        %v1029 = vpop.f32.mrb[0].mxu0
        %v1030 = vadd.f32 0.0, %v1029
        %v1031 = vpop.f32.mrb[0].mxu0
        %1032 = vdwg.mxu0
        %1034 = vrot.lane.b32.xlu0 %v1030, 8
        %v1035 = vpop.permute.xlu0 %1034
        %vm1037 = vcmask 130112
        %1038 = vst.msk [vmem:[#allocation2] sm:$0xff] %vm1037, %v1035
        %1039 = vrot.lane.b32.xlu0 %v544, 112
        %v1040 = vpop.permute.xlu0 %1039
        %1041 = vrot.lane.b32.xlu0 %v621, 112
        %v1042 = vpop.permute.xlu0 %1041
        %v1043 = vsel %vm705, %v1040, 0
        %v1045 = vsel %vm705, %v1042, 0
        %1047 = vmatprep.subr.mxu0 0.0
        %1048 = vmatpush1.xpose.msra.mxu0 %v1045
        %1049 = vmatprep.subr.mxu0 0.0
        %1050 = vmatpush1.xpose.msra.mxu0 0.0
        %1051 = vmatprep.subr.mxu0 0.0
        %1052 = vmatpush1.xpose.msra.mxu0 0.0
        %1053 = vmatprep.subr.mxu0 0.0
        %1054 = vmatpush1.xpose.msra.mxu0 0.0
        %1055 = vmatprep.subr.mxu0 0.0
        %1056 = vmatpush1.xpose.msra.mxu0 0.0
        %1057 = vmatprep.subr.mxu0 0.0
        %1058 = vmatpush1.xpose.msra.mxu0 0.0
        %1059 = vmatprep.subr.mxu0 0.0
        %1060 = vmatpush1.xpose.msra.mxu0 0.0
        %1061 = vmatprep.subr.mxu0 0.0
        %1062 = vmatpush1.xpose.msra.mxu0 0.0
        %1063 = vmatprep.subr.mxu0 0.0
        %1064 = vmatpush1.xpose.msra.mxu0 0.0
        %1065 = vmatprep.subr.mxu0 0.0
        %1066 = vmatpush1.xpose.msra.mxu0 0.0
        %1067 = vmatprep.subr.mxu0 0.0
        %1068 = vmatpush1.xpose.msra.mxu0 0.0
        %1069 = vmatprep.subr.mxu0 0.0
        %1070 = vmatpush1.xpose.msra.mxu0 0.0
        %1071 = vmatprep.subr.mxu0 0.0
        %1072 = vmatpush1.xpose.msra.mxu0 0.0
        %1073 = vmatprep.subr.mxu0 0.0
        %1074 = vmatpush1.xpose.msra.mxu0 0.0
        %1075 = vmatprep.subr.mxu0 0.0
        %1076 = vmatpush1.xpose.msra.mxu0 0.0
        %1077 = vmatprep.subr.mxu0 0.0
        %1078 = vmatpush1.xpose.msra.mxu0 0.0
        %1079 = vmatprep.subr.mxu0 0.0
        %1080 = vmatpush1.xpose.msra.mxu0 0.0
        %1081 = vmatprep.subr.mxu0 0.0
        %1082 = vmatpush1.xpose.msra.mxu0 0.0
        %1083 = vmatprep.subr.mxu0 0.0
        %1084 = vmatpush1.xpose.msra.mxu0 0.0
        %1085 = vmatprep.subr.mxu0 0.0
        %1086 = vmatpush1.xpose.msra.mxu0 0.0
        %1087 = vmatprep.subr.mxu0 0.0
        %1088 = vmatpush1.xpose.msra.mxu0 0.0
        %1089 = vmatprep.subr.mxu0 0.0
        %1090 = vmatpush1.xpose.msra.mxu0 0.0
        %1091 = vmatprep.subr.mxu0 0.0
        %1092 = vmatpush1.xpose.msra.mxu0 0.0
        %1093 = vmatprep.subr.mxu0 0.0
        %1094 = vmatpush1.xpose.msra.mxu0 0.0
        %1095 = vmatprep.subr.mxu0 0.0
        %1096 = vmatpush1.xpose.msra.mxu0 0.0
        %1097 = vmatprep.subr.mxu0 0.0
        %1098 = vmatpush1.xpose.msra.mxu0 0.0
        %1099 = vmatprep.subr.mxu0 0.0
        %1100 = vmatpush1.xpose.msra.mxu0 0.0
        %1101 = vmatprep.subr.mxu0 0.0
        %1102 = vmatpush1.xpose.msra.mxu0 0.0
        %1103 = vmatprep.subr.mxu0 0.0
        %1104 = vmatpush1.xpose.msra.mxu0 0.0
        %1105 = vmatprep.subr.mxu0 0.0
        %1106 = vmatpush1.xpose.msra.mxu0 0.0
        %1107 = vmatprep.subr.mxu0 0.0
        %1108 = vmatpush1.xpose.msra.mxu0 0.0
        %1109 = vmatprep.subr.mxu0 0.0
        %1110 = vmatpush1.xpose.msra.mxu0 0.0
        %1111 = vmatprep.mubr.f32.mxu0 0.0
        %1112 = vmatmul.mubr.f32.gmra.mrb[0].mxu0 %v1043
        %v1113 = vpop.f32.mrb[0].mxu0
        %v1114 = vadd.f32 0.0, %v1113
        %v1115 = vpop.f32.mrb[0].mxu0
        %1116 = vdwg.mxu0
        %v1117 = vsel %vm705, %v1114, -inf
        %1118 = vmax.xlane.f32.xlu0 %v1117
        %v1119 = vpop.xlane.xlu0 %1118
        %v1120 = vsub.f32 %v1114, %v1119
        %v1121 = vmul.f32 %v1120, 1.442695
        %v1122 = vpow.pop %v1121
        %v1123 = vsel %vm705, %v1122, 0.0
        %1124 = vadd.xlane.f32.xlu0 %v1123
        %v1125 = vpop.xlane.xlu0 %1124
        %v1126 = vrcp.pop %v1125
        %v1127 = vmul.f32 %v1122, %v1126
        %1128 = vrot.lane.b32.xlu0 %v702, 112
        %v1129 = vpop.permute.xlu0 %1128
        %v1132 = vsel %vm705, %v1127, 0
        %1134 = vmatprep.subr.mxu0 0.0
        %1135 = vmatpush1.msra.mxu0 %v1129
        %1136 = vmatprep.subr.mxu0 0.0
        %1137 = vmatpush1.msra.mxu0 0.0
        %1138 = vmatprep.subr.mxu0 0.0
        %1139 = vmatpush1.msra.mxu0 0.0
        %1140 = vmatprep.subr.mxu0 0.0
        %1141 = vmatpush1.msra.mxu0 0.0
        %1142 = vmatprep.subr.mxu0 0.0
        %1143 = vmatpush1.msra.mxu0 0.0
        %1144 = vmatprep.subr.mxu0 0.0
        %1145 = vmatpush1.msra.mxu0 0.0
        %1146 = vmatprep.subr.mxu0 0.0
        %1147 = vmatpush1.msra.mxu0 0.0
        %1148 = vmatprep.subr.mxu0 0.0
        %1149 = vmatpush1.msra.mxu0 0.0
        %1150 = vmatprep.subr.mxu0 0.0
        %1151 = vmatpush1.msra.mxu0 0.0
        %1152 = vmatprep.subr.mxu0 0.0
        %1153 = vmatpush1.msra.mxu0 0.0
        %1154 = vmatprep.subr.mxu0 0.0
        %1155 = vmatpush1.msra.mxu0 0.0
        %1156 = vmatprep.subr.mxu0 0.0
        %1157 = vmatpush1.msra.mxu0 0.0
        %1158 = vmatprep.subr.mxu0 0.0
        %1159 = vmatpush1.msra.mxu0 0.0
        %1160 = vmatprep.subr.mxu0 0.0
        %1161 = vmatpush1.msra.mxu0 0.0
        %1162 = vmatprep.subr.mxu0 0.0
        %1163 = vmatpush1.msra.mxu0 0.0
        %1164 = vmatprep.subr.mxu0 0.0
        %1165 = vmatpush1.msra.mxu0 0.0
        %1166 = vmatprep.subr.mxu0 0.0
        %1167 = vmatpush1.msra.mxu0 0.0
        %1168 = vmatprep.subr.mxu0 0.0
        %1169 = vmatpush1.msra.mxu0 0.0
        %1170 = vmatprep.subr.mxu0 0.0
        %1171 = vmatpush1.msra.mxu0 0.0
        %1172 = vmatprep.subr.mxu0 0.0
        %1173 = vmatpush1.msra.mxu0 0.0
        %1174 = vmatprep.subr.mxu0 0.0
        %1175 = vmatpush1.msra.mxu0 0.0
        %1176 = vmatprep.subr.mxu0 0.0
        %1177 = vmatpush1.msra.mxu0 0.0
        %1178 = vmatprep.subr.mxu0 0.0
        %1179 = vmatpush1.msra.mxu0 0.0
        %1180 = vmatprep.subr.mxu0 0.0
        %1181 = vmatpush1.msra.mxu0 0.0
        %1182 = vmatprep.subr.mxu0 0.0
        %1183 = vmatpush1.msra.mxu0 0.0
        %1184 = vmatprep.subr.mxu0 0.0
        %1185 = vmatpush1.msra.mxu0 0.0
        %1186 = vmatprep.subr.mxu0 0.0
        %1187 = vmatpush1.msra.mxu0 0.0
        %1188 = vmatprep.subr.mxu0 0.0
        %1189 = vmatpush1.msra.mxu0 0.0
        %1190 = vmatprep.subr.mxu0 0.0
        %1191 = vmatpush1.msra.mxu0 0.0
        %1192 = vmatprep.subr.mxu0 0.0
        %1193 = vmatpush1.msra.mxu0 0.0
        %1194 = vmatprep.subr.mxu0 0.0
        %1195 = vmatpush1.msra.mxu0 0.0
        %1196 = vmatprep.subr.mxu0 0.0
        %1197 = vmatpush1.msra.mxu0 0.0
        %1198 = vmatprep.mubr.f32.mxu0 0.0
        %1199 = vmatmul.mubr.f32.gmra.mrb[0].mxu0 %v1132
        %v1200 = vpop.f32.mrb[0].mxu0
        %v1201 = vadd.f32 0.0, %v1200
        %v1202 = vpop.f32.mrb[0].mxu0
        %1203 = vdwg.mxu0
        %1205 = vrot.lane.b32.xlu0 %v1201, 16
        %v1206 = vpop.permute.xlu0 %1205
        %vm1208 = vcmask 195712
        %1209 = vst.msk [vmem:[#allocation2] sm:$0xff] %vm1208, %v1206
        %1210 = vrot.lane.b32.xlu0 %v544, 104
        %v1211 = vpop.permute.xlu0 %1210
        %1212 = vrot.lane.b32.xlu0 %v621, 104
        %v1213 = vpop.permute.xlu0 %1212
        %v1214 = vsel %vm705, %v1211, 0
        %v1216 = vsel %vm705, %v1213, 0
        %1218 = vmatprep.subr.mxu0 0.0
        %1219 = vmatpush1.xpose.msra.mxu0 %v1216
        %1220 = vmatprep.subr.mxu0 0.0
        %1221 = vmatpush1.xpose.msra.mxu0 0.0
        %1222 = vmatprep.subr.mxu0 0.0
        %1223 = vmatpush1.xpose.msra.mxu0 0.0
        %1224 = vmatprep.subr.mxu0 0.0
        %1225 = vmatpush1.xpose.msra.mxu0 0.0
        %1226 = vmatprep.subr.mxu0 0.0
        %1227 = vmatpush1.xpose.msra.mxu0 0.0
        %1228 = vmatprep.subr.mxu0 0.0
        %1229 = vmatpush1.xpose.msra.mxu0 0.0
        %1230 = vmatprep.subr.mxu0 0.0
        %1231 = vmatpush1.xpose.msra.mxu0 0.0
        %1232 = vmatprep.subr.mxu0 0.0
        %1233 = vmatpush1.xpose.msra.mxu0 0.0
        %1234 = vmatprep.subr.mxu0 0.0
        %1235 = vmatpush1.xpose.msra.mxu0 0.0
        %1236 = vmatprep.subr.mxu0 0.0
        %1237 = vmatpush1.xpose.msra.mxu0 0.0
        %1238 = vmatprep.subr.mxu0 0.0
        %1239 = vmatpush1.xpose.msra.mxu0 0.0
        %1240 = vmatprep.subr.mxu0 0.0
        %1241 = vmatpush1.xpose.msra.mxu0 0.0
        %1242 = vmatprep.subr.mxu0 0.0
        %1243 = vmatpush1.xpose.msra.mxu0 0.0
        %1244 = vmatprep.subr.mxu0 0.0
        %1245 = vmatpush1.xpose.msra.mxu0 0.0
        %1246 = vmatprep.subr.mxu0 0.0
        %1247 = vmatpush1.xpose.msra.mxu0 0.0
        %1248 = vmatprep.subr.mxu0 0.0
        %1249 = vmatpush1.xpose.msra.mxu0 0.0
        %1250 = vmatprep.subr.mxu0 0.0
        %1251 = vmatpush1.xpose.msra.mxu0 0.0
        %1252 = vmatprep.subr.mxu0 0.0
        %1253 = vmatpush1.xpose.msra.mxu0 0.0
        %1254 = vmatprep.subr.mxu0 0.0
        %1255 = vmatpush1.xpose.msra.mxu0 0.0
        %1256 = vmatprep.subr.mxu0 0.0
        %1257 = vmatpush1.xpose.msra.mxu0 0.0
        %1258 = vmatprep.subr.mxu0 0.0
        %1259 = vmatpush1.xpose.msra.mxu0 0.0
        %1260 = vmatprep.subr.mxu0 0.0
        %1261 = vmatpush1.xpose.msra.mxu0 0.0
        %1262 = vmatprep.subr.mxu0 0.0
        %1263 = vmatpush1.xpose.msra.mxu0 0.0
        %1264 = vmatprep.subr.mxu0 0.0
        %1265 = vmatpush1.xpose.msra.mxu0 0.0
        %1266 = vmatprep.subr.mxu0 0.0
        %1267 = vmatpush1.xpose.msra.mxu0 0.0
        %1268 = vmatprep.subr.mxu0 0.0
        %1269 = vmatpush1.xpose.msra.mxu0 0.0
        %1270 = vmatprep.subr.mxu0 0.0
        %1271 = vmatpush1.xpose.msra.mxu0 0.0
        %1272 = vmatprep.subr.mxu0 0.0
        %1273 = vmatpush1.xpose.msra.mxu0 0.0
        %1274 = vmatprep.subr.mxu0 0.0
        %1275 = vmatpush1.xpose.msra.mxu0 0.0
        %1276 = vmatprep.subr.mxu0 0.0
        %1277 = vmatpush1.xpose.msra.mxu0 0.0
        %1278 = vmatprep.subr.mxu0 0.0
        %1279 = vmatpush1.xpose.msra.mxu0 0.0
        %1280 = vmatprep.subr.mxu0 0.0
        %1281 = vmatpush1.xpose.msra.mxu0 0.0
        %1282 = vmatprep.mubr.f32.mxu0 0.0
        %1283 = vmatmul.mubr.f32.gmra.mrb[0].mxu0 %v1214
        %v1284 = vpop.f32.mrb[0].mxu0
        %v1285 = vadd.f32 0.0, %v1284
        %v1286 = vpop.f32.mrb[0].mxu0
        %1287 = vdwg.mxu0
        %v1288 = vsel %vm705, %v1285, -inf
        %1289 = vmax.xlane.f32.xlu0 %v1288
        %v1290 = vpop.xlane.xlu0 %1289
        %v1291 = vsub.f32 %v1285, %v1290
        %v1292 = vmul.f32 %v1291, 1.442695
        %v1293 = vpow.pop %v1292
        %v1294 = vsel %vm705, %v1293, 0.0
        %1295 = vadd.xlane.f32.xlu0 %v1294
        %v1296 = vpop.xlane.xlu0 %1295
        %v1297 = vrcp.pop %v1296
        %v1298 = vmul.f32 %v1293, %v1297
        %1299 = vrot.lane.b32.xlu0 %v702, 104
        %v1300 = vpop.permute.xlu0 %1299
        %v1303 = vsel %vm705, %v1298, 0
        %1305 = vmatprep.subr.mxu0 0.0
        %1306 = vmatpush1.msra.mxu0 %v1300
        %1307 = vmatprep.subr.mxu0 0.0
        %1308 = vmatpush1.msra.mxu0 0.0
        %1309 = vmatprep.subr.mxu0 0.0
        %1310 = vmatpush1.msra.mxu0 0.0
        %1311 = vmatprep.subr.mxu0 0.0
        %1312 = vmatpush1.msra.mxu0 0.0
        %1313 = vmatprep.subr.mxu0 0.0
        %1314 = vmatpush1.msra.mxu0 0.0
        %1315 = vmatprep.subr.mxu0 0.0
        %1316 = vmatpush1.msra.mxu0 0.0
        %1317 = vmatprep.subr.mxu0 0.0
        %1318 = vmatpush1.msra.mxu0 0.0
        %1319 = vmatprep.subr.mxu0 0.0
        %1320 = vmatpush1.msra.mxu0 0.0
        %1321 = vmatprep.subr.mxu0 0.0
        %1322 = vmatpush1.msra.mxu0 0.0
        %1323 = vmatprep.subr.mxu0 0.0
        %1324 = vmatpush1.msra.mxu0 0.0
        %1325 = vmatprep.subr.mxu0 0.0
        %1326 = vmatpush1.msra.mxu0 0.0
        %1327 = vmatprep.subr.mxu0 0.0
        %1328 = vmatpush1.msra.mxu0 0.0
        %1329 = vmatprep.subr.mxu0 0.0
        %1330 = vmatpush1.msra.mxu0 0.0
        %1331 = vmatprep.subr.mxu0 0.0
        %1332 = vmatpush1.msra.mxu0 0.0
        %1333 = vmatprep.subr.mxu0 0.0
        %1334 = vmatpush1.msra.mxu0 0.0
        %1335 = vmatprep.subr.mxu0 0.0
        %1336 = vmatpush1.msra.mxu0 0.0
        %1337 = vmatprep.subr.mxu0 0.0
        %1338 = vmatpush1.msra.mxu0 0.0
        %1339 = vmatprep.subr.mxu0 0.0
        %1340 = vmatpush1.msra.mxu0 0.0
        %1341 = vmatprep.subr.mxu0 0.0
        %1342 = vmatpush1.msra.mxu0 0.0
        %1343 = vmatprep.subr.mxu0 0.0
        %1344 = vmatpush1.msra.mxu0 0.0
        %1345 = vmatprep.subr.mxu0 0.0
        %1346 = vmatpush1.msra.mxu0 0.0
        %1347 = vmatprep.subr.mxu0 0.0
        %1348 = vmatpush1.msra.mxu0 0.0
        %1349 = vmatprep.subr.mxu0 0.0
        %1350 = vmatpush1.msra.mxu0 0.0
        %1351 = vmatprep.subr.mxu0 0.0
        %1352 = vmatpush1.msra.mxu0 0.0
        %1353 = vmatprep.subr.mxu0 0.0
        %1354 = vmatpush1.msra.mxu0 0.0
        %1355 = vmatprep.subr.mxu0 0.0
        %1356 = vmatpush1.msra.mxu0 0.0
        %1357 = vmatprep.subr.mxu0 0.0
        %1358 = vmatpush1.msra.mxu0 0.0
        %1359 = vmatprep.subr.mxu0 0.0
        %1360 = vmatpush1.msra.mxu0 0.0
        %1361 = vmatprep.subr.mxu0 0.0
        %1362 = vmatpush1.msra.mxu0 0.0
        %1363 = vmatprep.subr.mxu0 0.0
        %1364 = vmatpush1.msra.mxu0 0.0
        %1365 = vmatprep.subr.mxu0 0.0
        %1366 = vmatpush1.msra.mxu0 0.0
        %1367 = vmatprep.subr.mxu0 0.0
        %1368 = vmatpush1.msra.mxu0 0.0
        %1369 = vmatprep.mubr.f32.mxu0 0.0
        %1370 = vmatmul.mubr.f32.gmra.mrb[0].mxu0 %v1303
        %v1371 = vpop.f32.mrb[0].mxu0
        %v1372 = vadd.f32 0.0, %v1371
        %v1373 = vpop.f32.mrb[0].mxu0
        %1374 = vdwg.mxu0
        %1376 = vrot.lane.b32.xlu0 %v1372, 24
        %v1377 = vpop.permute.xlu0 %1376
        %vm1379 = vcmask 261312
        %1380 = vst.msk [vmem:[#allocation2] sm:$0xff] %vm1379, %v1377
        %v1381 = vld [vmem:[#allocation2] sm:$0xff]
        %v1382 = vld [vmem:[#allocation12] sm:$0xff]
        %v1383 = vld [vmem:[#allocation12 + $0x8] sm:$0xff]
        %v1384 = vld [vmem:[#allocation12 + $0x10] sm:$0xff]
        %v1385 = vld [vmem:[#allocation12 + $0x18] sm:$0xff]
        %v1386 = vld [vmem:[%s8] sm:$0x1]
        %v1388 = vlaneseq
        %v1389 = vshrl.u32 %v1388, 7
        %v1390 = vsub.s32 0, %v1389
        %v1391 = vrot.slane %v1386, %v1390
        %v1394 = vsel %vm473, %v1381, 0
        %1396 = vmatprep.subr.mxu0 0.0
        %1397 = vmatpush1.msra.mxu0 %v1382
        %1398 = vmatprep.subr.mxu0 0.0
        %1399 = vmatpush1.msra.mxu0 %v1383
        %1400 = vmatprep.subr.mxu0 0.0
        %1401 = vmatpush1.msra.mxu0 %v1384
        %1402 = vmatprep.subr.mxu0 0.0
        %1403 = vmatpush1.msra.mxu0 %v1385
        %1404 = vmatprep.subr.mxu0 0.0
        %1405 = vmatpush1.msra.mxu0 0.0
        %1406 = vmatprep.subr.mxu0 0.0
        %1407 = vmatpush1.msra.mxu0 0.0
        %1408 = vmatprep.subr.mxu0 0.0
        %1409 = vmatpush1.msra.mxu0 0.0
        %1410 = vmatprep.subr.mxu0 0.0
        %1411 = vmatpush1.msra.mxu0 0.0
        %1412 = vmatprep.subr.mxu0 0.0
        %1413 = vmatpush1.msra.mxu0 0.0
        %1414 = vmatprep.subr.mxu0 0.0
        %1415 = vmatpush1.msra.mxu0 0.0
        %1416 = vmatprep.subr.mxu0 0.0
        %1417 = vmatpush1.msra.mxu0 0.0
        %1418 = vmatprep.subr.mxu0 0.0
        %1419 = vmatpush1.msra.mxu0 0.0
        %1420 = vmatprep.subr.mxu0 0.0
        %1421 = vmatpush1.msra.mxu0 0.0
        %1422 = vmatprep.subr.mxu0 0.0
        %1423 = vmatpush1.msra.mxu0 0.0
        %1424 = vmatprep.subr.mxu0 0.0
        %1425 = vmatpush1.msra.mxu0 0.0
        %1426 = vmatprep.subr.mxu0 0.0
        %1427 = vmatpush1.msra.mxu0 0.0
        %1428 = vmatprep.subr.mxu0 0.0
        %1429 = vmatpush1.msra.mxu0 0.0
        %1430 = vmatprep.subr.mxu0 0.0
        %1431 = vmatpush1.msra.mxu0 0.0
        %1432 = vmatprep.subr.mxu0 0.0
        %1433 = vmatpush1.msra.mxu0 0.0
        %1434 = vmatprep.subr.mxu0 0.0
        %1435 = vmatpush1.msra.mxu0 0.0
        %1436 = vmatprep.subr.mxu0 0.0
        %1437 = vmatpush1.msra.mxu0 0.0
        %1438 = vmatprep.subr.mxu0 0.0
        %1439 = vmatpush1.msra.mxu0 0.0
        %1440 = vmatprep.subr.mxu0 0.0
        %1441 = vmatpush1.msra.mxu0 0.0
        %1442 = vmatprep.subr.mxu0 0.0
        %1443 = vmatpush1.msra.mxu0 0.0
        %1444 = vmatprep.subr.mxu0 0.0
        %1445 = vmatpush1.msra.mxu0 0.0
        %1446 = vmatprep.subr.mxu0 0.0
        %1447 = vmatpush1.msra.mxu0 0.0
        %1448 = vmatprep.subr.mxu0 0.0
        %1449 = vmatpush1.msra.mxu0 0.0
        %1450 = vmatprep.subr.mxu0 0.0
        %1451 = vmatpush1.msra.mxu0 0.0
        %1452 = vmatprep.subr.mxu0 0.0
        %1453 = vmatpush1.msra.mxu0 0.0
        %1454 = vmatprep.subr.mxu0 0.0
        %1455 = vmatpush1.msra.mxu0 0.0
        %1456 = vmatprep.subr.mxu0 0.0
        %1457 = vmatpush1.msra.mxu0 0.0
        %1458 = vmatprep.subr.mxu0 0.0
        %1459 = vmatpush1.msra.mxu0 0.0
        %1460 = vmatprep.mubr.f32.mxu0 0.0
        %1461 = vmatmul.mubr.f32.gmra.mrb[0].mxu0 %v1394
        %v1462 = vpop.f32.mrb[0].mxu0
        %v1463 = vadd.f32 %v1391, %v1462
        %v1464 = vpop.f32.mrb[0].mxu0
        %1465 = vdwg.mxu0
        %1466 = vst.msk [vmem:[%s459] sm:$0xff] %vm473, %v1463
        %s1467 = sand.u32 %s254, 1
        %s1468 = scalar_lea.sflag [#allocation5], %s1467
        %s1469 = sand.u32 %s254, 1
        %s1470 = smul.addr %s1469, 8
        %s1471 = scalar_lea.vmem [#allocation14], %s1470
        // Predicated region
        $region81: #{tpu_custom_call.1} parent=55 // pred_check
          %p1472 = pneg %p264
        $region82: #{tpu_custom_call.1} parent=55 // pred_check_branch
          %1474 = sbr.rel (%p1472) target = $region84
        $region83: #{tpu_custom_call.1} parent=55 // pred_region
          %s1476 = ssub.s32 128, 128
          %1477 = vsyncadd %s1468, %s1476
          %s1478 = sadd.s32 %s36, %s35
          %s1479 = smul.addr %s1478, 128
          %s1480 = scalar_lea.hbm %s9, %s1479
          %s1482 = sshll.u32 %s1471, 4
          %s1483 = int_to_ptr.vmem [resolvable:$true] %s1482
          %1485 = dma.vmem_to_hbm [thread:$0]  %s1483, 128, %s1480, %s1468
        $region84: #{tpu_custom_call.1} parent=55 // pred_fallthru
          _
      $region56: #{tpu_custom_call.1} parent=5 // pred_fallthru
        _
      %p1486 = scmp.le.s32.totalorder 2, %s26
      // Predicated region
      $region85: #{tpu_custom_call.1} parent=5 // pred_check
        %p1487 = pneg %p1486
      $region86: #{tpu_custom_call.1} parent=5 // pred_check_branch
        %1489 = sbr.rel (%p1487) target = $region88
      $region87: #{tpu_custom_call.1} parent=5 // pred_region
        %s1490 = ssub.s32 %s26, 2
        // Predicated region
        $region89: #{tpu_custom_call.1} parent=87 // pred_check
          %p1491 = pneg %p270
        $region90: #{tpu_custom_call.1} parent=87 // pred_check_branch
          %1493 = sbr.rel (%p1491) target = $region92
        $region91: #{tpu_custom_call.1} parent=87 // pred_region
          %s1494 = sand.u32 %s255, 1
          %s1495 = scalar_lea.sflag [#allocation5], %s1494
          %s1496 = sand.u32 %s255, 1
          %s1497 = smul.addr %s1496, 8
          %s1498 = scalar_lea.vmem [#allocation14], %s1497
          %1499 = dma.done %s1495, 128
        $region92: #{tpu_custom_call.1} parent=87 // pred_fallthru
          _
      $region88: #{tpu_custom_call.1} parent=5 // pred_fallthru
        _
    $region6: #{tpu_custom_call.1} parent=1 // loop_footer
      %s30 = sadd.s32 1, %s26
    $region7: #{tpu_custom_call.1} parent=1 // loop_footer_branch
      %25 = sbr.rel target = $region3
    $region8: #{tpu_custom_call.1} parent=1 // loop_exit
      _
    %1500 = vsyncpa [#allocation4], 1
    %s1501 = scalar_lea.sflag [#allocation4], 1
    %1502 = vsyncpa %s1501, 1
    %1503 = vsyncpa [#allocation7], 1
    %s1504 = scalar_lea.sflag [#allocation7], 1
    %1505 = vsyncpa %s1504, 1
    %1506 = vsyncpa [#allocation10], 1
    %1507 = vsyncpa [#allocation13], 1
    %1508 = vsyncpa [#allocation5], 1
    %s1509 = scalar_lea.sflag [#allocation5], 1
    %1510 = vsyncpa %s1509, 1

</llo_original>
